<compile_context>
chip_gen: v7x
topology: tpu7x:2x2x1
jax: 0.10.0
libtpu: 0.0.40
codegen_flags: <defaults>
</compile_context>

<pallas_src>
import functools

import jax
import jax.numpy as jnp
from jax.experimental import pallas as pl
from jax.experimental.pallas import tpu as pltpu


def attn_decoder_kernel(
    ids_ref,       # (B,)           int32  [SMEM, scalar-prefetched] token ids
    hid_ref,       # (B, H)         f32
    cell_ref,      # (B, H)         f32
    enc_ref,       # (B, S8, H)     wdtype (zero-padded along S to mult of 8)
    emb_hbm_ref,   # (V, E)         wdtype [HBM/ANY] embedding table, row 0 zeroed
    attn_wh_ref,   # (H, H)         wdtype hidden half of attn.weight.T
    attn_we_ref,   # (H, H)         wdtype encoder half of attn.weight.T
    attn_b_ref,    # (1, H)         f32
    v_w_ref,       # (1, H)         f32
    rnn_we_ref,    # (E, 4H)        wdtype gate cols [i,f,o,g]
    rnn_wc_ref,    # (H, 4H)        wdtype
    rnn_wh_ref,    # (H, 4H)        wdtype
    rnn_b_ref,     # (1, 4H)        f32    b_ih + b_hh, [i,f,o,g]
    fc_wT_ref,     # (E+2H, TILE_V) wdtype one vocab tile, rows [out | w | emb]
    fc_b_ref,      # (1, TILE_V)    f32    one vocab tile
    pred_ref,      # (B, TILE_V)    f32    out (one vocab tile)
    h_ref,         # (B, H)         f32    out
    c_ref,         # (B, H)         f32    out
    a_ref,         # (B, S8)        f32    out
    emb_buf,       # (B, E)         wdtype scratch: gathered embedding rows
    y_buf,         # (B, 2H+E)      wdtype scratch: fc input [h | ctx | emb]
    dma_sem,       # (B,)           DMA semaphores
    *,
    seq_len: int,
):
    B, H = hid_ref.shape
    S8 = enc_ref.shape[1]
    f32 = jnp.float32
    wd = attn_we_ref.dtype

    # ---------------- preamble: embedding + attention + LSTM (once) ----------
    @pl.when(pl.program_id(0) == 0)
    def _preamble():
        # Embedding gather: DMA only the B needed rows out of HBM.
        copies = [
            pltpu.make_async_copy(
                emb_hbm_ref.at[pl.ds(ids_ref[b], 1), :],
                emb_buf.at[pl.ds(b, 1), :],
                dma_sem.at[b],
            )
            for b in range(B)
        ]
        for cp in copies:
            cp.start()
        for cp in copies:
            cp.wait()
        emb = emb_buf[...]                                    # (B, E) wdtype
        # TODO(synk): dropout is identity here (eval-mode semantics).

        hid = hid_ref[...]                                    # (B, H) f32
        cell = cell_ref[...]                                  # (B, H) f32
        enc = enc_ref[...]                                    # (B, S8, H) wdtype

        # Additive attention (scores / softmax kept in f32).
        part_h = jnp.dot(hid.astype(wd), attn_wh_ref[...],
                         preferred_element_type=f32)                       # (B, H)
        enc_flat = enc.reshape(B * S8, H)      # S8 % 8 == 0 -> tiling-preserving
        part_e = jnp.dot(enc_flat, attn_we_ref[...],
                         preferred_element_type=f32).reshape(B, S8, H)
        energy = jnp.tanh(part_e + part_h[:, None, :] + attn_b_ref[...])   # (B,S8,H)
        score = jnp.sum(energy * v_w_ref[...], axis=-1)                    # (B, S8) f32
        if S8 > seq_len:  # static: mask sublane padding out of the softmax
            col = jax.lax.broadcasted_iota(jnp.int32, score.shape, 1)
            score = jnp.where(col < seq_len, score, -1e30)
        m = jnp.max(score, axis=1, keepdims=True)
        ex = jnp.exp(score - m)
        denom = jnp.sum(ex, axis=1, keepdims=True)
        a = ex * pl.reciprocal(denom, approx=True)                         # (B, S8)

        # Context: multiply in compute dtype, accumulate the S-sum in f32
        # (no full f32 copy of enc).
        ctx = jnp.sum(a.astype(wd)[:, :, None] * enc, axis=1, dtype=f32)   # (B, H)

        # Single-step LSTM: three accumulating dots, gate order [i, f, o, g].
        gates = (jnp.dot(emb, rnn_we_ref[...], preferred_element_type=f32)
                 + jnp.dot(ctx.astype(wd), rnn_wc_ref[...], preferred_element_type=f32)
                 + jnp.dot(hid.astype(wd), rnn_wh_ref[...], preferred_element_type=f32)
                 + rnn_b_ref[...])                                         # (B, 4H)
        sig = jax.nn.sigmoid(gates[:, :3 * H])   # one EUP pass over i|f|o
        g_g = jnp.tanh(gates[:, 3 * H:])         # one EUP pass over g
        i_g = sig[:, :H]
        f_g = sig[:, H:2 * H]
        o_g = sig[:, 2 * H:]
        c_new = f_g * cell + i_g * g_g
        h_new = o_g * jnp.tanh(c_new)

        h_ref[...] = h_new
        c_ref[...] = c_new
        a_ref[...] = a

        # fc input stays VMEM-resident for all vocab tiles: [h | ctx | emb].
        y_buf[:, :H] = h_new.astype(wd)
        y_buf[:, H:2 * H] = ctx.astype(wd)
        y_buf[:, 2 * H:] = emb

    # --------- output projection: one lane-dense vocab tile per grid step ----
    pred_ref[...] = (
        jnp.dot(y_buf[...], fc_wT_ref[...], preferred_element_type=f32)
        + fc_b_ref[...]
    )


def _round_up(x, m):
    return ((x + m - 1) // m) * m


def _reorder_gates(w):
    """Rows [i, f, g, o] (PyTorch LSTM order) -> [i, f, o, g]."""
    i, f, g, o = jnp.split(w, 4, axis=0)
    return jnp.concatenate([i, f, o, g], axis=0)


def attn_decoder_forward(inp, hidden, cell, enc_out, params,
                         weight_dtype=jnp.bfloat16, tile_v=2048):
    """Wrapper: weight fusion / tiling (plain JAX) + one grid-tiled pallas_call.

    weight_dtype=bfloat16 (default) halves the HBM traffic of the fc/LSTM/emb
    streams; accumulation is float32 either way.  tile_v controls the vocab
    tile (multiple of 128; ~2048 for v7x, ~4096 for v6e, ~1024-2048 for v5e).
    """
    B, S, H = enc_out.shape
    V, E = params["emb_w"].shape
    f32 = jnp.float32
    LANE, SUB = 128, 8

    S8 = _round_up(S, SUB)                     # sublane pad only (compute-side)
    tile_v = max(LANE, (min(tile_v, _round_up(V, LANE)) // LANE) * LANE)
    V_pad = _round_up(V, tile_v)               # lane-dense, divisible by tile_v
    num_v_tiles = V_pad // tile_v

    # Token ids (clamped: dynamic HBM indexing has no bounds check).
    ids = jnp.clip(inp.reshape(B).astype(jnp.int32), 0, V - 1)

    # Embedding table stays in HBM; padding_idx=0 enforced here.
    emb_w = params["emb_w"].at[0].set(0.0).astype(weight_dtype)          # (V, E)

    # Encoder outputs: pad S to a multiple of 8 (masked out of the softmax).
    enc_pad = jnp.pad(enc_out, ((0, 0), (0, S8 - S), (0, 0))).astype(weight_dtype)

    # Attention weight pre-split into hidden / encoder halves.
    attn_wT = params["attn_w"].T                                          # (2H, H)
    attn_wh = attn_wT[:H, :].astype(weight_dtype)
    attn_we = attn_wT[H:, :].astype(weight_dtype)

    # LSTM weights pre-split ([emb | ctx] columns of w_ih, plus w_hh), gate
    # rows reordered to [i, f, o, g]; biases pre-summed.
    w_ih = _reorder_gates(params["w_ih"])                                 # (4H, E+H)
    w_hh = _reorder_gates(params["w_hh"])                                 # (4H, H)
    rnn_we = w_ih[:, :E].T.astype(weight_dtype)                           # (E, 4H)
    rnn_wc = w_ih[:, E:].T.astype(weight_dtype)                           # (H, 4H)
    rnn_wh = w_hh.T.astype(weight_dtype)                                  # (H, 4H)
    rnn_b = _reorder_gates((params["b_ih"] + params["b_hh"]).reshape(4 * H, 1))
    rnn_b = rnn_b.reshape(1, 4 * H).astype(f32)

    # Output projection, lane-padded vocab, rows ordered [out | w | emb].
    # TODO(synk): on v7x consider fp8 for fc_wT only (dominant HBM stream).
    fc_wT = jnp.pad(params["fc_w"].T, ((0, 0), (0, V_pad - V))).astype(weight_dtype)
    fc_b = jnp.pad(params["fc_b"], (0, V_pad - V)).reshape(1, V_pad).astype(f32)

    c2 = lambda j, ids_ref: (0, 0)
    c3 = lambda j, ids_ref: (0, 0, 0)
    vt = lambda j, ids_ref: (0, j)

    in_specs = [
        pl.BlockSpec((B, H), c2),                    # hidden
        pl.BlockSpec((B, H), c2),                    # cell
        pl.BlockSpec((B, S8, H), c3),                # enc_out
        pl.BlockSpec(memory_space=pl.ANY),           # embedding table (HBM)
        pl.BlockSpec((H, H), c2),                    # attn_wh
        pl.BlockSpec((H, H), c2),                    # attn_we
        pl.BlockSpec((1, H), c2),                    # attn_b
        pl.BlockSpec((1, H), c2),                    # v_w
        pl.BlockSpec((E, 4 * H), c2),                # rnn_we
        pl.BlockSpec((H, 4 * H), c2),                # rnn_wc
        pl.BlockSpec((H, 4 * H), c2),                # rnn_wh
        pl.BlockSpec((1, 4 * H), c2),                # rnn_b
        pl.BlockSpec((E + 2 * H, tile_v), vt),       # fc_wT  (tiled along V)
        pl.BlockSpec((1, tile_v), vt),               # fc_b   (tiled along V)
    ]
    out_specs = [
        pl.BlockSpec((B, tile_v), vt),               # pred   (tiled along V)
        pl.BlockSpec((B, H), c2),                    # h
        pl.BlockSpec((B, H), c2),                    # c
        pl.BlockSpec((B, S8), c2),                   # a (tiny, masked store)
    ]
    out_shapes = (
        jax.ShapeDtypeStruct((B, V_pad), f32),
        jax.ShapeDtypeStruct((B, H), f32),
        jax.ShapeDtypeStruct((B, H), f32),
        jax.ShapeDtypeStruct((B, S8), f32),
    )
    scratch_shapes = [
        pltpu.VMEM((B, E), weight_dtype),            # gathered embedding rows
        pltpu.VMEM((B, 2 * H + E), weight_dtype),    # fc input [h | ctx | emb]
        pltpu.SemaphoreType.DMA((B,)),
    ]

    grid_spec = pltpu.PrefetchScalarGridSpec(
        num_scalar_prefetch=1,                       # token ids -> SMEM
        grid=(num_v_tiles,),
        in_specs=in_specs,
        out_specs=out_specs,
        scratch_shapes=scratch_shapes,
    )

    wsize = jnp.dtype(weight_dtype).itemsize
    vmem_need = (
        2 * (E + 2 * H) * tile_v * wsize             # double-buffered fc weight tile
        + 2 * (B + 1) * tile_v * 4                   # double-buffered pred + fc_b tiles
        + 4 * B * S8 * H * 4                         # enc + attention temporaries
        + ((2 * H + E) * 4 * H + 2 * H * H) * wsize  # small resident weights
        + (1 << 20)                                  # headroom
    )
    vmem_limit = int(min(max(2 * vmem_need, 32 * 1024 * 1024), 64 * 1024 * 1024))

    compiler_params = pltpu.CompilerParams(
        # The preamble runs at grid index 0 and its scratch feeds every vocab
        # tile, so the axis is sequential ("arbitrary").
        # TODO(synk): on v7x mark the vocab axis "parallel" and recompute the
        # tiny preamble per TensorCore (or share y_buf via CMEM) for ~2x.
        dimension_semantics=("arbitrary",),
        vmem_limit_bytes=vmem_limit,
    )

    pred_pad, h, c, a_pad = pl.pallas_call(
        functools.partial(attn_decoder_kernel, seq_len=S),
        grid_spec=grid_spec,
        out_shape=out_shapes,
        compiler_params=compiler_params,
    )(ids,
      hidden.reshape(B, H).astype(f32),
      cell.reshape(B, H).astype(f32),
      enc_pad,
      emb_w,
      attn_wh,
      attn_we,
      params["attn_b"].reshape(1, H).astype(f32),
      params["v_w"].reshape(1, H).astype(f32),
      rnn_we, rnn_wc, rnn_wh, rnn_b,
      fc_wT, fc_b)

    # TODO(synk): in an autoregressive decode loop, alias hidden/cell via
    # input_output_aliases and fold the step loop into a grid axis (constant
    # weight index_map) / cross-call prefetch so weights are not re-DMA'd from
    # HBM every step.
    return pred_pad[:, :V], h[None], c[None], a_pad[:, :S]


def attn_decoder_reference(inp, hidden, cell, enc_out, params):
    """Pure-JAX reference mirroring the PyTorch forward (eval mode, f32)."""
    B, S, H = enc_out.shape
    emb = params["emb_w"][inp]                                         # (B, E)
    hid = hidden[0]                                                    # (B, H)

    h_rep = jnp.broadcast_to(hid[:, None, :], (B, S, H))
    cat = jnp.concatenate([h_rep, enc_out], axis=2)                    # (B, S, 2H)
    energy = jnp.tanh(cat @ params["attn_w"].T + params["attn_b"])     # (B, S, H)
    score = (energy @ params["v_w"].T)[..., 0]                         # (B, S)
    a = jax.nn.softmax(score, axis=1)

    w = jnp.einsum("bs,bsh->bh", a, enc_out)                           # (B, H)
    rnn_in = jnp.concatenate([emb, w], axis=1)                         # (B, E+H)
    gates = (rnn_in @ params["w_ih"].T + params["b_ih"]
             + hid @ params["w_hh"].T + params["b_hh"])
    i_g = jax.nn.sigmoid(gates[:, 0 * H:1 * H])
    f_g = jax.nn.sigmoid(gates[:, 1 * H:2 * H])
    g_g = jnp.tanh(gates[:, 2 * H:3 * H])
    o_g = jax.nn.sigmoid(gates[:, 3 * H:4 * H])
    c_new = f_g * cell[0] + i_g * g_g
    h_new = o_g * jnp.tanh(c_new)

    pred = (jnp.concatenate([h_new, w, emb], axis=1) @ params["fc_w"].T
            + params["fc_b"])
    return pred, h_new[None], c_new[None], a


if __name__ == "__main__":
    # Small shapes implied by the module's forward.
    B, S = 2, 12                # batch, source seq length (S8 = 16 -> mask path)
    E, H, V = 16, 32, 300       # emb_dim, hid_dim, out_dim (vocab; V_pad = 384)

    key = jax.random.PRNGKey(0)
    ks = jax.random.split(key, 16)

    def init(k, shape, scale=0.1):
        return (scale * jax.random.normal(k, shape)).astype(jnp.float32)

    emb_w = init(ks[0], (V, E)).at[0].set(0.0)   # padding_idx=0 -> zero row
    params = dict(
        emb_w=emb_w,
        attn_w=init(ks[1], (H, 2 * H)),
        attn_b=init(ks[2], (H,)),
        v_w=init(ks[3], (1, H)),
        w_ih=init(ks[4], (4 * H, E + H)),
        w_hh=init(ks[5], (4 * H, H)),
        b_ih=init(ks[6], (4 * H,)),
        b_hh=init(ks[7], (4 * H,)),
        fc_w=init(ks[8], (V, E + 2 * H)),
        fc_b=init(ks[9], (V,)),
    )

    inp = jax.random.randint(ks[10], (B,), 0, V, dtype=jnp.int32)
    hidden = init(ks[11], (1, B, H), scale=1.0)
    cell = init(ks[12], (1, B, H), scale=1.0)
    enc_out = init(ks[13], (B, S, H), scale=1.0)

    pred_r, h_r, c_r, a_r = attn_decoder_reference(inp, hidden, cell, enc_out, params)

    # f32 weights, tile_v=128 -> 3 vocab tiles: tight parity with the reference
    # (slack is only the approximate EUP reciprocal in the softmax).
    pred, h, c, a = attn_decoder_forward(inp, hidden, cell, enc_out, params,
                                         weight_dtype=jnp.float32, tile_v=128)
    jax.block_until_ready((pred, h, c, a))
    assert jnp.allclose(pred, pred_r, atol=5e-3, rtol=5e-3)
    assert jnp.allclose(h, h_r, atol=5e-3, rtol=5e-3)
    assert jnp.allclose(c, c_r, atol=5e-3, rtol=5e-3)
    assert jnp.allclose(a, a_r, atol=5e-3, rtol=5e-3)

    # bf16 weights/activations (recommended default): looser tolerance.
    pred_b, h_b, c_b, a_b = attn_decoder_forward(inp, hidden, cell, enc_out, params,
                                                 weight_dtype=jnp.bfloat16, tile_v=256)
    jax.block_until_ready((pred_b, h_b, c_b, a_b))
    assert jnp.allclose(pred_b, pred_r, atol=5e-2, rtol=5e-2)
    assert jnp.allclose(h_b, h_r, atol=5e-2, rtol=5e-2)
    assert jnp.allclose(c_b, c_r, atol=5e-2, rtol=5e-2)
    assert jnp.allclose(a_b, a_r, atol=5e-2, rtol=5e-2)

    print("KERNEL_OK")
</pallas_src>

<mosaic_0001>
module attributes {stable_mosaic.version = 11 : i64} {
  func.func @attn_decoder_kernel(%arg0: i32, %arg1: memref<2xi32, #tpu.memory_space<smem>>, %arg2: memref<2x32xf32, #tpu.memory_space<vmem>>, %arg3: memref<2x32xf32, #tpu.memory_space<vmem>>, %arg4: memref<2x16x32xf32, #tpu.memory_space<vmem>>, %arg5: memref<300x16xf32, #tpu.memory_space<any>>, %arg6: memref<32x32xf32, #tpu.memory_space<vmem>>, %arg7: memref<32x32xf32, #tpu.memory_space<vmem>>, %arg8: memref<1x32xf32, #tpu.memory_space<vmem>>, %arg9: memref<1x32xf32, #tpu.memory_space<vmem>>, %arg10: memref<16x128xf32, #tpu.memory_space<vmem>>, %arg11: memref<32x128xf32, #tpu.memory_space<vmem>>, %arg12: memref<32x128xf32, #tpu.memory_space<vmem>>, %arg13: memref<1x128xf32, #tpu.memory_space<vmem>>, %arg14: memref<80x128xf32, #tpu.memory_space<vmem>>, %arg15: memref<1x128xf32, #tpu.memory_space<vmem>>, %arg16: memref<2x128xf32, #tpu.memory_space<vmem>>, %arg17: memref<2x32xf32, #tpu.memory_space<vmem>>, %arg18: memref<2x32xf32, #tpu.memory_space<vmem>>, %arg19: memref<2x16xf32, #tpu.memory_space<vmem>>, %arg20: memref<2x16xf32, #tpu.memory_space<vmem>>, %arg21: memref<2x80xf32, #tpu.memory_space<vmem>>, %arg22: memref<2x!tpu.dma_semaphore, #tpu.memory_space<semaphore_mem>>) attributes {dimension_semantics = [#tpu.dimension_semantics<arbitrary>], iteration_bounds = array<i64: 3>, scalar_prefetch = 1 : i64, scratch_operands = 3 : i64, tpu.core_type = #tpu.core_type<tc>, window_params = [{pipeline_mode = #tpu.pipeline_mode<synchronous>, transform_indices = @transform_0, window_bounds = array<i64: 2, 32>}, {pipeline_mode = #tpu.pipeline_mode<synchronous>, transform_indices = @transform_1, window_bounds = array<i64: 2, 32>}, {pipeline_mode = #tpu.pipeline_mode<synchronous>, transform_indices = @transform_2, window_bounds = array<i64: 2, 16, 32>}, {}, {pipeline_mode = #tpu.pipeline_mode<synchronous>, transform_indices = @transform_4, window_bounds = array<i64: 32, 32>}, {pipeline_mode = #tpu.pipeline_mode<synchronous>, transform_indices = @transform_5, window_bounds = array<i64: 32, 32>}, {pipeline_mode = #tpu.pipeline_mode<synchronous>, transform_indices = @transform_6, window_bounds = array<i64: 1, 32>}, {pipeline_mode = #tpu.pipeline_mode<synchronous>, transform_indices = @transform_7, window_bounds = array<i64: 1, 32>}, {pipeline_mode = #tpu.pipeline_mode<synchronous>, transform_indices = @transform_8, window_bounds = array<i64: 16, 128>}, {pipeline_mode = #tpu.pipeline_mode<synchronous>, transform_indices = @transform_9, window_bounds = array<i64: 32, 128>}, {pipeline_mode = #tpu.pipeline_mode<synchronous>, transform_indices = @transform_10, window_bounds = array<i64: 32, 128>}, {pipeline_mode = #tpu.pipeline_mode<synchronous>, transform_indices = @transform_11, window_bounds = array<i64: 1, 128>}, {transform_indices = @transform_12, window_bounds = array<i64: 80, 128>}, {transform_indices = @transform_13, window_bounds = array<i64: 1, 128>}, {transform_indices = @transform_14, window_bounds = array<i64: 2, 128>}, {pipeline_mode = #tpu.pipeline_mode<synchronous>, transform_indices = @transform_15, window_bounds = array<i64: 2, 32>}, {pipeline_mode = #tpu.pipeline_mode<synchronous>, transform_indices = @transform_16, window_bounds = array<i64: 2, 32>}, {pipeline_mode = #tpu.pipeline_mode<synchronous>, transform_indices = @transform_17, window_bounds = array<i64: 2, 16>}]} {
    %c0_i32 = arith.constant 0 : i32
    %0 = arith.cmpi eq, %arg0, %c0_i32 : i32
    %1 = arith.extui %0 : i1 to i32
    %c0_i32_0 = arith.constant 0 : i32
    %2 = arith.cmpi ne, %1, %c0_i32_0 : i32
    scf.if %2 {
      %c0_8 = arith.constant 0 : index
      %10 = memref.load %arg1[%c0_8] : memref<2xi32, #tpu.memory_space<smem>>
      %c1 = arith.constant 1 : index
      %11 = memref.load %arg1[%c1] : memref<2xi32, #tpu.memory_space<smem>>
      %c0_i32_9 = arith.constant 0 : i32
      %c0_i32_10 = arith.constant 0 : i32
      %12 = tpu.memref_slice %arg5[%10, %c0_i32_10] : memref<300x16xf32, #tpu.memory_space<any>> -> memref<1x16xf32, #tpu.memory_space<any>>
      %c0_i32_11 = arith.constant 0 : i32
      %c0_i32_12 = arith.constant 0 : i32
      %13 = tpu.memref_slice %arg20[%c0_i32_11, %c0_i32_12] : memref<2x16xf32, #tpu.memory_space<vmem>> -> memref<1x16xf32, #tpu.memory_space<vmem>>
      %14 = tpu.memref_slice %arg22[%c0_i32_9] : memref<2x!tpu.dma_semaphore, #tpu.memory_space<semaphore_mem>> -> memref<1x!tpu.dma_semaphore, #tpu.memory_space<semaphore_mem>>
      %15 = tpu.memref_squeeze %14 : memref<1x!tpu.dma_semaphore, #tpu.memory_space<semaphore_mem>> -> memref<!tpu.dma_semaphore, #tpu.memory_space<semaphore_mem>>
      tpu.enqueue_dma source(%12 : memref<1x16xf32, #tpu.memory_space<any>>) target(%13 : memref<1x16xf32, #tpu.memory_space<vmem>>) target_semaphore(%15 : memref<!tpu.dma_semaphore, #tpu.memory_space<semaphore_mem>>)
      %c1_i32 = arith.constant 1 : i32
      %c0_i32_13 = arith.constant 0 : i32
      %16 = tpu.memref_slice %arg5[%11, %c0_i32_13] : memref<300x16xf32, #tpu.memory_space<any>> -> memref<1x16xf32, #tpu.memory_space<any>>
      %c1_i32_14 = arith.constant 1 : i32
      %c0_i32_15 = arith.constant 0 : i32
      %17 = tpu.memref_slice %arg20[%c1_i32_14, %c0_i32_15] : memref<2x16xf32, #tpu.memory_space<vmem>> -> memref<1x16xf32, #tpu.memory_space<vmem>>
      %18 = tpu.memref_slice %arg22[%c1_i32] : memref<2x!tpu.dma_semaphore, #tpu.memory_space<semaphore_mem>> -> memref<1x!tpu.dma_semaphore, #tpu.memory_space<semaphore_mem>>
      %19 = tpu.memref_squeeze %18 : memref<1x!tpu.dma_semaphore, #tpu.memory_space<semaphore_mem>> -> memref<!tpu.dma_semaphore, #tpu.memory_space<semaphore_mem>>
      tpu.enqueue_dma source(%16 : memref<1x16xf32, #tpu.memory_space<any>>) target(%17 : memref<1x16xf32, #tpu.memory_space<vmem>>) target_semaphore(%19 : memref<!tpu.dma_semaphore, #tpu.memory_space<semaphore_mem>>)
      %c0_i32_16 = arith.constant 0 : i32
      %c0_i32_17 = arith.constant 0 : i32
      %20 = tpu.memref_slice %arg5[%10, %c0_i32_17] : memref<300x16xf32, #tpu.memory_space<any>> -> memref<1x16xf32, #tpu.memory_space<any>>
      %c0_i32_18 = arith.constant 0 : i32
      %c0_i32_19 = arith.constant 0 : i32
      %21 = tpu.memref_slice %arg20[%c0_i32_18, %c0_i32_19] : memref<2x16xf32, #tpu.memory_space<vmem>> -> memref<1x16xf32, #tpu.memory_space<vmem>>
      %22 = tpu.memref_slice %arg22[%c0_i32_16] : memref<2x!tpu.dma_semaphore, #tpu.memory_space<semaphore_mem>> -> memref<1x!tpu.dma_semaphore, #tpu.memory_space<semaphore_mem>>
      %23 = tpu.memref_squeeze %22 : memref<1x!tpu.dma_semaphore, #tpu.memory_space<semaphore_mem>> -> memref<!tpu.dma_semaphore, #tpu.memory_space<semaphore_mem>>
      tpu.wait_dma2 semaphore(%23 : memref<!tpu.dma_semaphore, #tpu.memory_space<semaphore_mem>>) src(%20 : memref<1x16xf32, #tpu.memory_space<any>>) dst(%21 : memref<1x16xf32, #tpu.memory_space<vmem>>)
      %c1_i32_20 = arith.constant 1 : i32
      %c0_i32_21 = arith.constant 0 : i32
      %24 = tpu.memref_slice %arg5[%11, %c0_i32_21] : memref<300x16xf32, #tpu.memory_space<any>> -> memref<1x16xf32, #tpu.memory_space<any>>
      %c1_i32_22 = arith.constant 1 : i32
      %c0_i32_23 = arith.constant 0 : i32
      %25 = tpu.memref_slice %arg20[%c1_i32_22, %c0_i32_23] : memref<2x16xf32, #tpu.memory_space<vmem>> -> memref<1x16xf32, #tpu.memory_space<vmem>>
      %26 = tpu.memref_slice %arg22[%c1_i32_20] : memref<2x!tpu.dma_semaphore, #tpu.memory_space<semaphore_mem>> -> memref<1x!tpu.dma_semaphore, #tpu.memory_space<semaphore_mem>>
      %27 = tpu.memref_squeeze %26 : memref<1x!tpu.dma_semaphore, #tpu.memory_space<semaphore_mem>> -> memref<!tpu.dma_semaphore, #tpu.memory_space<semaphore_mem>>
      tpu.wait_dma2 semaphore(%27 : memref<!tpu.dma_semaphore, #tpu.memory_space<semaphore_mem>>) src(%24 : memref<1x16xf32, #tpu.memory_space<any>>) dst(%25 : memref<1x16xf32, #tpu.memory_space<vmem>>)
      %c0_24 = arith.constant 0 : index
      %c0_25 = arith.constant 0 : index
      %28 = vector.load %arg20[%c0_24, %c0_25] : memref<2x16xf32, #tpu.memory_space<vmem>>, vector<2x16xf32>
      %c0_26 = arith.constant 0 : index
      %c0_27 = arith.constant 0 : index
      %29 = vector.load %arg2[%c0_26, %c0_27] : memref<2x32xf32, #tpu.memory_space<vmem>>, vector<2x32xf32>
      %c0_28 = arith.constant 0 : index
      %c0_29 = arith.constant 0 : index
      %30 = vector.load %arg3[%c0_28, %c0_29] : memref<2x32xf32, #tpu.memory_space<vmem>>, vector<2x32xf32>
      %c0_30 = arith.constant 0 : index
      %c0_31 = arith.constant 0 : index
      %c0_32 = arith.constant 0 : index
      %31 = vector.load %arg4[%c0_30, %c0_31, %c0_32] : memref<2x16x32xf32, #tpu.memory_space<vmem>>, vector<2x16x32xf32>
      %c0_33 = arith.constant 0 : index
      %c0_34 = arith.constant 0 : index
      %32 = vector.load %arg6[%c0_33, %c0_34] : memref<32x32xf32, #tpu.memory_space<vmem>>, vector<32x32xf32>
      %cst_35 = arith.constant dense<0.000000e+00> : vector<2x32xf32>
      %33 = tpu.matmul %29, %32, %cst_35 {dimension_numbers = #tpu.dot_dimension_numbers<[1], [0], [0], [1], [0, 0, 1, 1], [], []>} : vector<2x32xf32>, vector<32x32xf32>, vector<2x32xf32> -> vector<2x32xf32>
      %34 = vector.shape_cast %31 : vector<2x16x32xf32> to vector<32x32xf32>
      %c0_36 = arith.constant 0 : index
      %c0_37 = arith.constant 0 : index
      %35 = vector.load %arg7[%c0_36, %c0_37] : memref<32x32xf32, #tpu.memory_space<vmem>>, vector<32x32xf32>
      %cst_38 = arith.constant dense<0.000000e+00> : vector<32x32xf32>
      %36 = tpu.matmul %34, %35, %cst_38 {dimension_numbers = #tpu.dot_dimension_numbers<[1], [0], [0], [1], [0, 0, 1, 1], [], []>} : vector<32x32xf32>, vector<32x32xf32>, vector<32x32xf32> -> vector<32x32xf32>
      %37 = vector.shape_cast %36 : vector<32x32xf32> to vector<2x16x32xf32>
      %38 = vector.shape_cast %33 : vector<2x32xf32> to vector<2x1x32xf32>
      %39 = vector.broadcast %38 : vector<2x1x32xf32> to vector<2x16x32xf32>
      %40 = arith.addf %37, %39 : vector<2x16x32xf32>
      %c0_39 = arith.constant 0 : index
      %c0_40 = arith.constant 0 : index
      %41 = vector.load %arg8[%c0_39, %c0_40] : memref<1x32xf32, #tpu.memory_space<vmem>>, vector<1x32xf32>
      %42 = vector.shape_cast %41 : vector<1x32xf32> to vector<1x1x32xf32>
      %43 = vector.broadcast %42 : vector<1x1x32xf32> to vector<2x16x32xf32>
      %44 = arith.addf %40, %43 : vector<2x16x32xf32>
      %45 = math.tanh %44 : vector<2x16x32xf32>
      %c0_41 = arith.constant 0 : index
      %c0_42 = arith.constant 0 : index
      %46 = vector.load %arg9[%c0_41, %c0_42] : memref<1x32xf32, #tpu.memory_space<vmem>>, vector<1x32xf32>
      %47 = vector.shape_cast %46 : vector<1x32xf32> to vector<1x1x32xf32>
      %48 = vector.broadcast %47 : vector<1x1x32xf32> to vector<2x16x32xf32>
      %49 = arith.mulf %45, %48 : vector<2x16x32xf32>
      %cst_43 = arith.constant dense<0.000000e+00> : vector<2x16xf32>
      %50 = vector.multi_reduction <add>, %49, %cst_43 [2] : vector<2x16x32xf32> to vector<2x16xf32>
      %51 = tpu.iota {dimensions = array<i32: 1>} : vector<2x16xi32>
      %c12_i32 = arith.constant 12 : i32
      %52 = vector.broadcast %c12_i32 : i32 to vector<2x16xi32>
      %53 = arith.cmpi slt, %51, %52 : vector<2x16xi32>
      %cst_44 = arith.constant -1.000000e+30 : f32
      %54 = vector.broadcast %cst_44 : f32 to vector<2x16xf32>
      %55 = arith.select %53, %50, %54 : vector<2x16xi1>, vector<2x16xf32>
      %cst_45 = arith.constant dense<0xFF800000> : vector<2xf32>
      %56 = vector.multi_reduction <maximumf>, %55, %cst_45 [1] : vector<2x16xf32> to vector<2xf32>
      %57 = vector.shape_cast %56 : vector<2xf32> to vector<2x1xf32>
      %58 = vector.broadcast %57 : vector<2x1xf32> to vector<2x16xf32>
      %59 = arith.subf %55, %58 : vector<2x16xf32>
      %60 = math.exp %59 : vector<2x16xf32>
      %cst_46 = arith.constant dense<0.000000e+00> : vector<2xf32>
      %61 = vector.multi_reduction <add>, %60, %cst_46 [1] : vector<2x16xf32> to vector<2xf32>
      %62 = vector.shape_cast %61 : vector<2xf32> to vector<2x1xf32>
      %63 = tpu.reciprocal %62 {approx = true} : vector<2x1xf32> -> vector<2x1xf32>
      %64 = vector.broadcast %63 : vector<2x1xf32> to vector<2x16xf32>
      %65 = arith.mulf %60, %64 : vector<2x16xf32>
      %66 = vector.shape_cast %65 : vector<2x16xf32> to vector<2x16x1xf32>
      %67 = vector.broadcast %66 : vector<2x16x1xf32> to vector<2x16x32xf32>
      %68 = arith.mulf %67, %31 : vector<2x16x32xf32>
      %cst_47 = arith.constant dense<0.000000e+00> : vector<2x32xf32>
      %69 = vector.multi_reduction <add>, %68, %cst_47 [1] : vector<2x16x32xf32> to vector<2x32xf32>
      %c0_48 = arith.constant 0 : index
      %c0_49 = arith.constant 0 : index
      %70 = vector.load %arg10[%c0_48, %c0_49] : memref<16x128xf32, #tpu.memory_space<vmem>>, vector<16x128xf32>
      %cst_50 = arith.constant dense<0.000000e+00> : vector<2x128xf32>
      %71 = tpu.matmul %28, %70, %cst_50 {dimension_numbers = #tpu.dot_dimension_numbers<[1], [0], [0], [1], [0, 0, 1, 1], [], []>} : vector<2x16xf32>, vector<16x128xf32>, vector<2x128xf32> -> vector<2x128xf32>
      %c0_51 = arith.constant 0 : index
      %c0_52 = arith.constant 0 : index
      %72 = vector.load %arg11[%c0_51, %c0_52] : memref<32x128xf32, #tpu.memory_space<vmem>>, vector<32x128xf32>
      %cst_53 = arith.constant dense<0.000000e+00> : vector<2x128xf32>
      %73 = tpu.matmul %69, %72, %cst_53 {dimension_numbers = #tpu.dot_dimension_numbers<[1], [0], [0], [1], [0, 0, 1, 1], [], []>} : vector<2x32xf32>, vector<32x128xf32>, vector<2x128xf32> -> vector<2x128xf32>
      %74 = arith.addf %71, %73 : vector<2x128xf32>
      %c0_54 = arith.constant 0 : index
      %c0_55 = arith.constant 0 : index
      %75 = vector.load %arg12[%c0_54, %c0_55] : memref<32x128xf32, #tpu.memory_space<vmem>>, vector<32x128xf32>
      %cst_56 = arith.constant dense<0.000000e+00> : vector<2x128xf32>
      %76 = tpu.matmul %29, %75, %cst_56 {dimension_numbers = #tpu.dot_dimension_numbers<[1], [0], [0], [1], [0, 0, 1, 1], [], []>} : vector<2x32xf32>, vector<32x128xf32>, vector<2x128xf32> -> vector<2x128xf32>
      %77 = arith.addf %74, %76 : vector<2x128xf32>
      %c0_57 = arith.constant 0 : index
      %c0_58 = arith.constant 0 : index
      %78 = vector.load %arg13[%c0_57, %c0_58] : memref<1x128xf32, #tpu.memory_space<vmem>>, vector<1x128xf32>
      %79 = vector.broadcast %78 : vector<1x128xf32> to vector<2x128xf32>
      %80 = arith.addf %77, %79 : vector<2x128xf32>
      %81 = vector.extract_strided_slice %80 {offsets = [0, 0], sizes = [2, 96], strides = [1, 1]} : vector<2x128xf32> to vector<2x96xf32>
      %82 = arith.negf %81 : vector<2x96xf32>
      %83 = math.exp %82 : vector<2x96xf32>
      %cst_59 = arith.constant 1.000000e+00 : f32
      %84 = vector.broadcast %cst_59 : f32 to vector<2x96xf32>
      %85 = arith.addf %84, %83 : vector<2x96xf32>
      %86 = arith.divf %84, %85 : vector<2x96xf32>
      %87 = vector.extract_strided_slice %80 {offsets = [0, 96], sizes = [2, 32], strides = [1, 1]} : vector<2x128xf32> to vector<2x32xf32>
      %88 = math.tanh %87 : vector<2x32xf32>
      %89 = vector.extract_strided_slice %86 {offsets = [0, 0], sizes = [2, 32], strides = [1, 1]} : vector<2x96xf32> to vector<2x32xf32>
      %90 = vector.extract_strided_slice %86 {offsets = [0, 32], sizes = [2, 32], strides = [1, 1]} : vector<2x96xf32> to vector<2x32xf32>
      %91 = vector.extract_strided_slice %86 {offsets = [0, 64], sizes = [2, 32], strides = [1, 1]} : vector<2x96xf32> to vector<2x32xf32>
      %92 = arith.mulf %90, %30 : vector<2x32xf32>
      %93 = arith.mulf %89, %88 : vector<2x32xf32>
      %94 = arith.addf %92, %93 : vector<2x32xf32>
      %95 = math.tanh %94 : vector<2x32xf32>
      %96 = arith.mulf %91, %95 : vector<2x32xf32>
      %c0_60 = arith.constant 0 : index
      %c0_61 = arith.constant 0 : index
      %97 = vector.load %arg17[%c0_60, %c0_61] : memref<2x32xf32, #tpu.memory_space<vmem>>, vector<2x32xf32>
      tpu.vector_store %arg17[%c0_60, %c0_61], %96 {strides = array<i32>} : memref<2x32xf32, #tpu.memory_space<vmem>>, vector<2x32xf32>,
      %c0_62 = arith.constant 0 : index
      %c0_63 = arith.constant 0 : index
      %98 = vector.load %arg18[%c0_62, %c0_63] : memref<2x32xf32, #tpu.memory_space<vmem>>, vector<2x32xf32>
      tpu.vector_store %arg18[%c0_62, %c0_63], %94 {strides = array<i32>} : memref<2x32xf32, #tpu.memory_space<vmem>>, vector<2x32xf32>,
      %c0_64 = arith.constant 0 : index
      %c0_65 = arith.constant 0 : index
      %99 = vector.load %arg19[%c0_64, %c0_65] : memref<2x16xf32, #tpu.memory_space<vmem>>, vector<2x16xf32>
      tpu.vector_store %arg19[%c0_64, %c0_65], %65 {strides = array<i32>} : memref<2x16xf32, #tpu.memory_space<vmem>>, vector<2x16xf32>,
      %c0_66 = arith.constant 0 : index
      %c0_67 = arith.constant 0 : index
      %100 = vector.load %arg21[%c0_66, %c0_67] : memref<2x80xf32, #tpu.memory_space<vmem>>, vector<2x32xf32>
      tpu.vector_store %arg21[%c0_66, %c0_67], %96 {strides = array<i32>} : memref<2x80xf32, #tpu.memory_space<vmem>>, vector<2x32xf32>,
      %c0_68 = arith.constant 0 : index
      %c32 = arith.constant 32 : index
      %101 = vector.load %arg21[%c0_68, %c32] : memref<2x80xf32, #tpu.memory_space<vmem>>, vector<2x32xf32>
      tpu.vector_store %arg21[%c0_68, %c32], %69 {strides = array<i32>} : memref<2x80xf32, #tpu.memory_space<vmem>>, vector<2x32xf32>,
      %c0_69 = arith.constant 0 : index
      %c64 = arith.constant 64 : index
      %102 = vector.load %arg21[%c0_69, %c64] : memref<2x80xf32, #tpu.memory_space<vmem>>, vector<2x16xf32>
      tpu.vector_store %arg21[%c0_69, %c64], %28 {strides = array<i32>} : memref<2x80xf32, #tpu.memory_space<vmem>>, vector<2x16xf32>,
    } else {
    }
    %c0 = arith.constant 0 : index
    %c0_1 = arith.constant 0 : index
    %3 = vector.load %arg21[%c0, %c0_1] : memref<2x80xf32, #tpu.memory_space<vmem>>, vector<2x80xf32>
    %c0_2 = arith.constant 0 : index
    %c0_3 = arith.constant 0 : index
    %4 = vector.load %arg14[%c0_2, %c0_3] : memref<80x128xf32, #tpu.memory_space<vmem>>, vector<80x128xf32>
    %cst = arith.constant dense<0.000000e+00> : vector<2x128xf32>
    %5 = tpu.matmul %3, %4, %cst {dimension_numbers = #tpu.dot_dimension_numbers<[1], [0], [0], [1], [0, 0, 1, 1], [], []>} : vector<2x80xf32>, vector<80x128xf32>, vector<2x128xf32> -> vector<2x128xf32>
    %c0_4 = arith.constant 0 : index
    %c0_5 = arith.constant 0 : index
    %6 = vector.load %arg15[%c0_4, %c0_5] : memref<1x128xf32, #tpu.memory_space<vmem>>, vector<1x128xf32>
    %7 = vector.broadcast %6 : vector<1x128xf32> to vector<2x128xf32>
    %8 = arith.addf %5, %7 : vector<2x128xf32>
    %c0_6 = arith.constant 0 : index
    %c0_7 = arith.constant 0 : index
    %9 = vector.load %arg16[%c0_6, %c0_7] : memref<2x128xf32, #tpu.memory_space<vmem>>, vector<2x128xf32>
    tpu.vector_store %arg16[%c0_6, %c0_7], %8 {strides = array<i32>} : memref<2x128xf32, #tpu.memory_space<vmem>>, vector<2x128xf32>,
    return
  }
  func.func @transform_0(%arg0: i32, %arg1: memref<2xi32, #tpu.memory_space<smem>>) -> (i32, i32) {
    %c0_i32 = arith.constant 0 : i32
    %c0_i32_0 = arith.constant 0 : i32
    %c0_i32_1 = arith.constant 0 : i32
    return %c0_i32, %c0_i32_0 : i32, i32
  }
  func.func @transform_1(%arg0: i32, %arg1: memref<2xi32, #tpu.memory_space<smem>>) -> (i32, i32) {
    %c0_i32 = arith.constant 0 : i32
    %c0_i32_0 = arith.constant 0 : i32
    %c0_i32_1 = arith.constant 0 : i32
    return %c0_i32, %c0_i32_0 : i32, i32
  }
  func.func @transform_2(%arg0: i32, %arg1: memref<2xi32, #tpu.memory_space<smem>>) -> (i32, i32, i32) {
    %c0_i32 = arith.constant 0 : i32
    %c0_i32_0 = arith.constant 0 : i32
    %c0_i32_1 = arith.constant 0 : i32
    %c0_i32_2 = arith.constant 0 : i32
    return %c0_i32, %c0_i32_0, %c0_i32_1 : i32, i32, i32
  }
  func.func @transform_4(%arg0: i32, %arg1: memref<2xi32, #tpu.memory_space<smem>>) -> (i32, i32) {
    %c0_i32 = arith.constant 0 : i32
    %c0_i32_0 = arith.constant 0 : i32
    %c0_i32_1 = arith.constant 0 : i32
    return %c0_i32, %c0_i32_0 : i32, i32
  }
  func.func @transform_5(%arg0: i32, %arg1: memref<2xi32, #tpu.memory_space<smem>>) -> (i32, i32) {
    %c0_i32 = arith.constant 0 : i32
    %c0_i32_0 = arith.constant 0 : i32
    %c0_i32_1 = arith.constant 0 : i32
    return %c0_i32, %c0_i32_0 : i32, i32
  }
  func.func @transform_6(%arg0: i32, %arg1: memref<2xi32, #tpu.memory_space<smem>>) -> (i32, i32) {
    %c0_i32 = arith.constant 0 : i32
    %c0_i32_0 = arith.constant 0 : i32
    %c0_i32_1 = arith.constant 0 : i32
    return %c0_i32, %c0_i32_0 : i32, i32
  }
  func.func @transform_7(%arg0: i32, %arg1: memref<2xi32, #tpu.memory_space<smem>>) -> (i32, i32) {
    %c0_i32 = arith.constant 0 : i32
    %c0_i32_0 = arith.constant 0 : i32
    %c0_i32_1 = arith.constant 0 : i32
    return %c0_i32, %c0_i32_0 : i32, i32
  }
  func.func @transform_8(%arg0: i32, %arg1: memref<2xi32, #tpu.memory_space<smem>>) -> (i32, i32) {
    %c0_i32 = arith.constant 0 : i32
    %c0_i32_0 = arith.constant 0 : i32
    %c0_i32_1 = arith.constant 0 : i32
    return %c0_i32, %c0_i32_0 : i32, i32
  }
  func.func @transform_9(%arg0: i32, %arg1: memref<2xi32, #tpu.memory_space<smem>>) -> (i32, i32) {
    %c0_i32 = arith.constant 0 : i32
    %c0_i32_0 = arith.constant 0 : i32
    %c0_i32_1 = arith.constant 0 : i32
    return %c0_i32, %c0_i32_0 : i32, i32
  }
  func.func @transform_10(%arg0: i32, %arg1: memref<2xi32, #tpu.memory_space<smem>>) -> (i32, i32) {
    %c0_i32 = arith.constant 0 : i32
    %c0_i32_0 = arith.constant 0 : i32
    %c0_i32_1 = arith.constant 0 : i32
    return %c0_i32, %c0_i32_0 : i32, i32
  }
  func.func @transform_11(%arg0: i32, %arg1: memref<2xi32, #tpu.memory_space<smem>>) -> (i32, i32) {
    %c0_i32 = arith.constant 0 : i32
    %c0_i32_0 = arith.constant 0 : i32
    %c0_i32_1 = arith.constant 0 : i32
    return %c0_i32, %c0_i32_0 : i32, i32
  }
  func.func @transform_12(%arg0: i32, %arg1: memref<2xi32, #tpu.memory_space<smem>>) -> (i32, i32) {
    %c0_i32 = arith.constant 0 : i32
    %c0_i32_0 = arith.constant 0 : i32
    return %c0_i32, %arg0 : i32, i32
  }
  func.func @transform_13(%arg0: i32, %arg1: memref<2xi32, #tpu.memory_space<smem>>) -> (i32, i32) {
    %c0_i32 = arith.constant 0 : i32
    %c0_i32_0 = arith.constant 0 : i32
    return %c0_i32, %arg0 : i32, i32
  }
  func.func @transform_14(%arg0: i32, %arg1: memref<2xi32, #tpu.memory_space<smem>>) -> (i32, i32) {
    %c0_i32 = arith.constant 0 : i32
    %c0_i32_0 = arith.constant 0 : i32
    return %c0_i32, %arg0 : i32, i32
  }
  func.func @transform_15(%arg0: i32, %arg1: memref<2xi32, #tpu.memory_space<smem>>) -> (i32, i32) {
    %c0_i32 = arith.constant 0 : i32
    %c0_i32_0 = arith.constant 0 : i32
    %c0_i32_1 = arith.constant 0 : i32
    return %c0_i32, %c0_i32_0 : i32, i32
  }
  func.func @transform_16(%arg0: i32, %arg1: memref<2xi32, #tpu.memory_space<smem>>) -> (i32, i32) {
    %c0_i32 = arith.constant 0 : i32
    %c0_i32_0 = arith.constant 0 : i32
    %c0_i32_1 = arith.constant 0 : i32
    return %c0_i32, %c0_i32_0 : i32, i32
  }
  func.func @transform_17(%arg0: i32, %arg1: memref<2xi32, #tpu.memory_space<smem>>) -> (i32, i32) {
    %c0_i32 = arith.constant 0 : i32
    %c0_i32_0 = arith.constant 0 : i32
    %c0_i32_1 = arith.constant 0 : i32
    return %c0_i32, %c0_i32_0 : i32, i32
  }
}

</mosaic_0001>

<llo_original>
// kernel: tpu_custom_call.1
$region0: #{tpu_custom_call.1}
  #allocation0 [shape = 'u32[]', space=smem, size = 0x4, offset = 0x4, fixed_abs, tag = 'smem constant byte address 0x4 - core index']
  #allocation1 [shape = 'u32[144,128]{1,0:T(1,128)}', space=vmem, size = 0x12000, scoped, tag = 'internal scratch']
  #allocation2 [shape = 'f32[2,16]{1,0:T(2,128)}', space=vmem, size = 0x400, scoped, tag = 'scratch operand']
  #allocation3 [shape = 'f32[2,80]{1,0:T(2,128)}', space=vmem, size = 0x400, scoped, tag = 'scratch operand']
  #allocation4 [shape = 's32[2]{0}', space=sflag, size = 0x8, scoped, tag = 'scratch operand']
  #allocation5 [shape = 's32[1]{0}', space=sflag, size = 0x4, scoped, tag = 'scoped memory for tpu_custom_call.1']
  #allocation6 [shape = 'u8[512]{0}', space=smem, size = 0x200, scoped, tag = 'prefetched SMEM operand 0']
  #allocation25 [shape = 's32[]', space=sflag, size = 0x4, offset = 0, fixed_abs, tag = 'sflag constant byte address 0x0 - dummy sync flag']
  #allocation26 [shape = 's32[]', space=sflag, size = 0x4, offset = 0, fixed_abs, tag = 'sflag constant byte address 0x0 - dummy sync flag']
  %s0 = inlined_call_operand.vmem [shape: s32[2], index: 0, kind: input, shape index: {}]
  %s1 = inlined_call_operand.hbm [shape: f32[2,32], index: 1, kind: input, shape index: {}]
  %s2 = inlined_call_operand.hbm [shape: f32[2,32], index: 2, kind: input, shape index: {}]
  %s3 = inlined_call_operand.vmem [shape: f32[2,16,32], index: 3, kind: input, shape index: {}]
  %s4 = inlined_call_operand.vmem [shape: f32[300,16], index: 4, kind: input, shape index: {}]
  %s5 = inlined_call_operand.vmem [shape: f32[32,32], index: 5, kind: input, shape index: {}]
  %s6 = inlined_call_operand.vmem [shape: f32[32,32], index: 6, kind: input, shape index: {}]
  %s7 = inlined_call_operand.hbm [shape: f32[1,32], index: 7, kind: input, shape index: {}]
  %s8 = inlined_call_operand.hbm [shape: f32[1,32], index: 8, kind: input, shape index: {}]
  %s9 = inlined_call_operand.hbm [shape: f32[16,128], index: 9, kind: input, shape index: {}]
  %s10 = inlined_call_operand.vmem [shape: f32[32,128], index: 10, kind: input, shape index: {}]
  %s11 = inlined_call_operand.vmem [shape: f32[32,128], index: 11, kind: input, shape index: {}]
  %s12 = inlined_call_operand.hbm [shape: f32[1,128], index: 12, kind: input, shape index: {}]
  %s13 = inlined_call_operand.vmem [shape: f32[80,384], index: 13, kind: input, shape index: {}]
  %s14 = inlined_call_operand.vmem [shape: f32[1,384], index: 14, kind: input, shape index: {}]
  %s15 = inlined_call_operand.hbm [shape: f32[2,384], index: 15, kind: output, shape index: {0}]
  %s16 = inlined_call_operand.hbm [shape: f32[2,32], index: 16, kind: output, shape index: {1}]
  %s17 = inlined_call_operand.hbm [shape: f32[2,32], index: 17, kind: output, shape index: {2}]
  %s18 = inlined_call_operand.hbm [shape: f32[2,16], index: 18, kind: output, shape index: {3}]
  %19 = xla_tuple %s15, %s16, %s17, %s18
  %s20 = sld [smem:[#allocation0]]
  $region235: #{tpu_custom_call.1} parent=0
    _
  %s22 = ssub.s32 1, %s20
  %s23 = scalar_select 0, %s22, %s20
  %s24 = sshll.u32 %s0, 4
  %s25 = int_to_ptr.vmem [resolvable:$true] %s24
  %27 = dma.vmem_to_smem %s25, 16, [#allocation6], [#allocation5]
  %28 = dma.done [#allocation5], 16
  %29 = sfence
  $region1: #{tpu_custom_call.1} parent=0
    #allocation7 [shape = 'u8[1024]{0}', space=vmem, size = 0x400, scoped, tag = 'input window, operand 1, single buffered']
    #allocation8 [shape = 's32[2]{0}', space=sflag, size = 0x8, scoped, tag = 'scoped memory for tpu_custom_call.1']
    #allocation9 [shape = 's32[2]{0}', space=sflag, size = 0x8, scoped, tag = 'scoped memory for tpu_custom_call.1']
    #allocation10 [shape = 'u8[1024]{0}', space=vmem, size = 0x400, scoped, tag = 'input window, operand 2, single buffered']
    #allocation11 [shape = 's32[1]{0}', space=sflag, size = 0x4, scoped, tag = 'scoped memory for tpu_custom_call.1']
    #allocation12 [shape = 'u8[512]{0}', space=vmem, size = 0x400, scoped, tag = 'input window, operand 7, single buffered']
    #allocation13 [shape = 'u8[512]{0}', space=vmem, size = 0x400, scoped, tag = 'input window, operand 8, single buffered']
    #allocation14 [shape = 's32[1]{0}', space=sflag, size = 0x4, scoped, tag = 'scoped memory for tpu_custom_call.1']
    #allocation15 [shape = 'u8[8192]{0}', space=vmem, size = 0x2000, scoped, tag = 'input window, operand 9, single buffered']
    #allocation16 [shape = 'u8[512]{0}', space=vmem, size = 0x400, scoped, tag = 'input window, operand 12, single buffered']
    #allocation17 [shape = 's32[1]{0}', space=sflag, size = 0x4, scoped, tag = 'scoped memory for tpu_custom_call.1']
    #allocation18 [shape = 'u8[81920]{0}', space=vmem, size = 0x14000, scoped, tag = 'input window, operand 13']
    #allocation19 [shape = 'u8[2048]{0}', space=vmem, size = 0x800, scoped, tag = 'output window, operand 0']
    #allocation20 [shape = 'u8[1024]{0}', space=vmem, size = 0x400, scoped, tag = 'output window, operand 1, single buffered']
    #allocation21 [shape = 's32[1]{0}', space=sflag, size = 0x4, scoped, tag = 'scoped memory for tpu_custom_call.1']
    #allocation22 [shape = 'u8[1024]{0}', space=vmem, size = 0x400, scoped, tag = 'output window, operand 2, single buffered']
    #allocation23 [shape = 'u8[1024]{0}', space=vmem, size = 0x400, scoped, tag = 'output window, operand 3, single buffered']
    #allocation24 [shape = 's32[1]{0}', space=sflag, size = 0x4, scoped, tag = 'scoped memory for tpu_custom_call.1']
    %30 = vsyncpa [#allocation8], 0
    %31 = vsyncpa [#allocation11], 0
    %32 = vsyncpa [#allocation14], 0
    %33 = vsyncpa [#allocation17], 0
    %34 = vsyncpa [#allocation9], 0
    %s35 = scalar_lea.sflag [#allocation9], 1
    %36 = vsyncpa %s35, 0
    %37 = vsyncpa [#allocation21], 0
    %38 = vsyncpa [#allocation24], 0
    loop: start=0, step=1, limit=5
    $region2: #{tpu_custom_call.1} parent=1 // loop_pre_header
      _
    $region3: #{tpu_custom_call.1} parent=1 // loop_header
      %s40 = sphi 0, %s44
      %p41 = scmp.ge.s32.totalorder %s40, 5
      %s48 = sphi 0, %s48
      %s50 = sphi 0, %s48
      %s51 = sphi 0, %s50
      %s65 = sphi 0, %s51
      %s69 = sphi 0, %s69
      %s71 = sphi 0, %s69
      %s72 = sphi 0, %s71
      %s86 = sphi 0, %s72
      %s90 = sphi 0, %s90
      %s92 = sphi 0, %s90
      %s93 = sphi 0, %s92
      %s107 = sphi 0, %s93
      %s111 = sphi 0, %s111
      %s113 = sphi 0, %s111
      %s114 = sphi 0, %s113
      %s128 = sphi 0, %s114
      %s132 = sphi 0, %s132
      %s134 = sphi 0, %s132
      %s135 = sphi 0, %s134
      %s149 = sphi 0, %s135
      %s153 = sphi 0, %s153
      %s155 = sphi 0, %s153
      %s156 = sphi 0, %s155
      %s170 = sphi 0, %s156
      %s174 = sphi 0, %s174
      %s176 = sphi 0, %s174
      %s177 = sphi 0, %s176
      %s191 = sphi 0, %s177
      %s195 = sphi 0, %s195
      %s197 = sphi 0, %s195
      %s198 = sphi 0, %s197
      %s212 = sphi 0, %s198
      %s216 = sphi 0, %s216
      %s218 = sphi 0, %s216
      %s219 = sphi 0, %s218
      %s233 = sphi 0, %s219
      %s237 = sphi 0, %s237
      %s239 = sphi 0, %s237
      %s240 = sphi 0, %s239
      %s254 = sphi 0, %s240
      %s258 = sphi 0, %s258
      %s260 = sphi 0, %s258
      %s261 = sphi 0, %s260
      %s275 = sphi 0, %s261
      %s281 = sphi 0, %s283
      %s284 = sphi 0, %s281
      %s285 = sphi 0, %s284
      %s301 = sphi 0, %s285
      %s307 = sphi 0, %s309
      %s310 = sphi 0, %s307
      %s311 = sphi 0, %s310
      %s327 = sphi 0, %s311
      %s333 = sphi 0, %s335
      %s336 = sphi 0, %s333
      %s337 = sphi 0, %s336
      %s353 = sphi 0, %s337
      %s357 = sphi 0, %s357
      %s359 = sphi 0, %s357
      %s360 = sphi 0, %s359
      %s374 = sphi 0, %s360
      %s378 = sphi 0, %s378
      %s380 = sphi 0, %s378
      %s381 = sphi 0, %s380
      %s395 = sphi 0, %s381
      %s399 = sphi 0, %s399
      %s401 = sphi 0, %s399
      %s402 = sphi 0, %s401
      %s416 = sphi 0, %s402
    $region4: #{tpu_custom_call.1} parent=1 // loop_header_branch
      %43 = sbr.rel (%p41) target = $region8
    $region5: #{tpu_custom_call.1} parent=1 // loop_body
      %s45 = ssub.s32 %s40, 1
      %s46 = ssub.s32 %s40, 2
      %s47 = sadd.s32 %s40, 1
      %s49 = sadd.s32 %s48, 1
      %p52 = scmp.eq.s32.totalorder %s40, 2
      %p53 = scmp.ne.s32.totalorder %s48, %s50
      %p54 = scmp.eq.s32.totalorder %s40, 0
      %p55 = por %p53, %p54
      %p56 = scmp.ne.s32.totalorder %s48, %s50
      %p57 = scmp.eq.s32.totalorder %s45, 2
      %p58 = por %p56, %p57
      %p59 = scmp.ne.s32.totalorder %s50, %s51
      %p60 = scmp.eq.s32.totalorder %s45, 0
      %p61 = por %p59, %p60
      %p62 = scmp.ne.s32.totalorder %s50, %s51
      %p63 = scmp.eq.s32.totalorder %s46, 2
      %p64 = por %p62, %p63
      %p66 = scmp.ne.s32.totalorder %s51, %s65
      %p67 = scmp.eq.s32.totalorder %s46, 0
      %p68 = por %p66, %p67
      %s70 = sadd.s32 %s69, 1
      %p73 = scmp.eq.s32.totalorder %s40, 2
      %p74 = scmp.ne.s32.totalorder %s69, %s71
      %p75 = scmp.eq.s32.totalorder %s40, 0
      %p76 = por %p74, %p75
      %p77 = scmp.ne.s32.totalorder %s69, %s71
      %p78 = scmp.eq.s32.totalorder %s45, 2
      %p79 = por %p77, %p78
      %p80 = scmp.ne.s32.totalorder %s71, %s72
      %p81 = scmp.eq.s32.totalorder %s45, 0
      %p82 = por %p80, %p81
      %p83 = scmp.ne.s32.totalorder %s71, %s72
      %p84 = scmp.eq.s32.totalorder %s46, 2
      %p85 = por %p83, %p84
      %p87 = scmp.ne.s32.totalorder %s72, %s86
      %p88 = scmp.eq.s32.totalorder %s46, 0
      %p89 = por %p87, %p88
      %s91 = sadd.s32 %s90, 1
      %p94 = scmp.eq.s32.totalorder %s40, 2
      %p95 = scmp.ne.s32.totalorder %s90, %s92
      %p96 = scmp.eq.s32.totalorder %s40, 0
      %p97 = por %p95, %p96
      %p98 = scmp.ne.s32.totalorder %s90, %s92
      %p99 = scmp.eq.s32.totalorder %s45, 2
      %p100 = por %p98, %p99
      %p101 = scmp.ne.s32.totalorder %s92, %s93
      %p102 = scmp.eq.s32.totalorder %s45, 0
      %p103 = por %p101, %p102
      %p104 = scmp.ne.s32.totalorder %s92, %s93
      %p105 = scmp.eq.s32.totalorder %s46, 2
      %p106 = por %p104, %p105
      %p108 = scmp.ne.s32.totalorder %s93, %s107
      %p109 = scmp.eq.s32.totalorder %s46, 0
      %p110 = por %p108, %p109
      %s112 = sadd.s32 %s111, 1
      %p115 = scmp.eq.s32.totalorder %s40, 2
      %p116 = scmp.ne.s32.totalorder %s111, %s113
      %p117 = scmp.eq.s32.totalorder %s40, 0
      %p118 = por %p116, %p117
      %p119 = scmp.ne.s32.totalorder %s111, %s113
      %p120 = scmp.eq.s32.totalorder %s45, 2
      %p121 = por %p119, %p120
      %p122 = scmp.ne.s32.totalorder %s113, %s114
      %p123 = scmp.eq.s32.totalorder %s45, 0
      %p124 = por %p122, %p123
      %p125 = scmp.ne.s32.totalorder %s113, %s114
      %p126 = scmp.eq.s32.totalorder %s46, 2
      %p127 = por %p125, %p126
      %p129 = scmp.ne.s32.totalorder %s114, %s128
      %p130 = scmp.eq.s32.totalorder %s46, 0
      %p131 = por %p129, %p130
      %s133 = sadd.s32 %s132, 1
      %p136 = scmp.eq.s32.totalorder %s40, 2
      %p137 = scmp.ne.s32.totalorder %s132, %s134
      %p138 = scmp.eq.s32.totalorder %s40, 0
      %p139 = por %p137, %p138
      %p140 = scmp.ne.s32.totalorder %s132, %s134
      %p141 = scmp.eq.s32.totalorder %s45, 2
      %p142 = por %p140, %p141
      %p143 = scmp.ne.s32.totalorder %s134, %s135
      %p144 = scmp.eq.s32.totalorder %s45, 0
      %p145 = por %p143, %p144
      %p146 = scmp.ne.s32.totalorder %s134, %s135
      %p147 = scmp.eq.s32.totalorder %s46, 2
      %p148 = por %p146, %p147
      %p150 = scmp.ne.s32.totalorder %s135, %s149
      %p151 = scmp.eq.s32.totalorder %s46, 0
      %p152 = por %p150, %p151
      %s154 = sadd.s32 %s153, 1
      %p157 = scmp.eq.s32.totalorder %s40, 2
      %p158 = scmp.ne.s32.totalorder %s153, %s155
      %p159 = scmp.eq.s32.totalorder %s40, 0
      %p160 = por %p158, %p159
      %p161 = scmp.ne.s32.totalorder %s153, %s155
      %p162 = scmp.eq.s32.totalorder %s45, 2
      %p163 = por %p161, %p162
      %p164 = scmp.ne.s32.totalorder %s155, %s156
      %p165 = scmp.eq.s32.totalorder %s45, 0
      %p166 = por %p164, %p165
      %p167 = scmp.ne.s32.totalorder %s155, %s156
      %p168 = scmp.eq.s32.totalorder %s46, 2
      %p169 = por %p167, %p168
      %p171 = scmp.ne.s32.totalorder %s156, %s170
      %p172 = scmp.eq.s32.totalorder %s46, 0
      %p173 = por %p171, %p172
      %s175 = sadd.s32 %s174, 1
      %p178 = scmp.eq.s32.totalorder %s40, 2
      %p179 = scmp.ne.s32.totalorder %s174, %s176
      %p180 = scmp.eq.s32.totalorder %s40, 0
      %p181 = por %p179, %p180
      %p182 = scmp.ne.s32.totalorder %s174, %s176
      %p183 = scmp.eq.s32.totalorder %s45, 2
      %p184 = por %p182, %p183
      %p185 = scmp.ne.s32.totalorder %s176, %s177
      %p186 = scmp.eq.s32.totalorder %s45, 0
      %p187 = por %p185, %p186
      %p188 = scmp.ne.s32.totalorder %s176, %s177
      %p189 = scmp.eq.s32.totalorder %s46, 2
      %p190 = por %p188, %p189
      %p192 = scmp.ne.s32.totalorder %s177, %s191
      %p193 = scmp.eq.s32.totalorder %s46, 0
      %p194 = por %p192, %p193
      %s196 = sadd.s32 %s195, 1
      %p199 = scmp.eq.s32.totalorder %s40, 2
      %p200 = scmp.ne.s32.totalorder %s195, %s197
      %p201 = scmp.eq.s32.totalorder %s40, 0
      %p202 = por %p200, %p201
      %p203 = scmp.ne.s32.totalorder %s195, %s197
      %p204 = scmp.eq.s32.totalorder %s45, 2
      %p205 = por %p203, %p204
      %p206 = scmp.ne.s32.totalorder %s197, %s198
      %p207 = scmp.eq.s32.totalorder %s45, 0
      %p208 = por %p206, %p207
      %p209 = scmp.ne.s32.totalorder %s197, %s198
      %p210 = scmp.eq.s32.totalorder %s46, 2
      %p211 = por %p209, %p210
      %p213 = scmp.ne.s32.totalorder %s198, %s212
      %p214 = scmp.eq.s32.totalorder %s46, 0
      %p215 = por %p213, %p214
      %s217 = sadd.s32 %s216, 1
      %p220 = scmp.eq.s32.totalorder %s40, 2
      %p221 = scmp.ne.s32.totalorder %s216, %s218
      %p222 = scmp.eq.s32.totalorder %s40, 0
      %p223 = por %p221, %p222
      %p224 = scmp.ne.s32.totalorder %s216, %s218
      %p225 = scmp.eq.s32.totalorder %s45, 2
      %p226 = por %p224, %p225
      %p227 = scmp.ne.s32.totalorder %s218, %s219
      %p228 = scmp.eq.s32.totalorder %s45, 0
      %p229 = por %p227, %p228
      %p230 = scmp.ne.s32.totalorder %s218, %s219
      %p231 = scmp.eq.s32.totalorder %s46, 2
      %p232 = por %p230, %p231
      %p234 = scmp.ne.s32.totalorder %s219, %s233
      %p235 = scmp.eq.s32.totalorder %s46, 0
      %p236 = por %p234, %p235
      %s238 = sadd.s32 %s237, 1
      %p241 = scmp.eq.s32.totalorder %s40, 2
      %p242 = scmp.ne.s32.totalorder %s237, %s239
      %p243 = scmp.eq.s32.totalorder %s40, 0
      %p244 = por %p242, %p243
      %p245 = scmp.ne.s32.totalorder %s237, %s239
      %p246 = scmp.eq.s32.totalorder %s45, 2
      %p247 = por %p245, %p246
      %p248 = scmp.ne.s32.totalorder %s239, %s240
      %p249 = scmp.eq.s32.totalorder %s45, 0
      %p250 = por %p248, %p249
      %p251 = scmp.ne.s32.totalorder %s239, %s240
      %p252 = scmp.eq.s32.totalorder %s46, 2
      %p253 = por %p251, %p252
      %p255 = scmp.ne.s32.totalorder %s240, %s254
      %p256 = scmp.eq.s32.totalorder %s46, 0
      %p257 = por %p255, %p256
      %s259 = sadd.s32 %s258, 1
      %p262 = scmp.eq.s32.totalorder %s40, 2
      %p263 = scmp.ne.s32.totalorder %s258, %s260
      %p264 = scmp.eq.s32.totalorder %s40, 0
      %p265 = por %p263, %p264
      %p266 = scmp.ne.s32.totalorder %s258, %s260
      %p267 = scmp.eq.s32.totalorder %s45, 2
      %p268 = por %p266, %p267
      %p269 = scmp.ne.s32.totalorder %s260, %s261
      %p270 = scmp.eq.s32.totalorder %s45, 0
      %p271 = por %p269, %p270
      %p272 = scmp.ne.s32.totalorder %s260, %s261
      %p273 = scmp.eq.s32.totalorder %s46, 2
      %p274 = por %p272, %p273
      %p276 = scmp.ne.s32.totalorder %s261, %s275
      %p277 = scmp.eq.s32.totalorder %s46, 0
      %p278 = por %p276, %p277
      %s279 = ssub.s32 %s40, %s47
      %p280 = scmp.eq.s32.totalorder %s279, 0
      %s282 = sadd.s32 %s281, 1
      %s283 = scalar_select %p280, %s281, %s282
      %p286 = pneg %p280
      %p287 = scmp.eq.s32.totalorder %s40, 2
      %p288 = por %p286, %p287
      %p289 = scmp.ne.s32.totalorder %s281, %s284
      %p290 = scmp.eq.s32.totalorder %s40, 0
      %p291 = por %p289, %p290
      %p292 = scmp.ne.s32.totalorder %s281, %s284
      %p293 = scmp.eq.s32.totalorder %s45, 2
      %p294 = por %p292, %p293
      %p295 = scmp.ne.s32.totalorder %s284, %s285
      %p296 = scmp.eq.s32.totalorder %s45, 0
      %p297 = por %p295, %p296
      %p298 = scmp.ne.s32.totalorder %s284, %s285
      %p299 = scmp.eq.s32.totalorder %s46, 2
      %p300 = por %p298, %p299
      %p302 = scmp.ne.s32.totalorder %s285, %s301
      %p303 = scmp.eq.s32.totalorder %s46, 0
      %p304 = por %p302, %p303
      %s305 = ssub.s32 %s40, %s47
      %p306 = scmp.eq.s32.totalorder %s305, 0
      %s308 = sadd.s32 %s307, 1
      %s309 = scalar_select %p306, %s307, %s308
      %p312 = pneg %p306
      %p313 = scmp.eq.s32.totalorder %s40, 2
      %p314 = por %p312, %p313
      %p315 = scmp.ne.s32.totalorder %s307, %s310
      %p316 = scmp.eq.s32.totalorder %s40, 0
      %p317 = por %p315, %p316
      %p318 = scmp.ne.s32.totalorder %s307, %s310
      %p319 = scmp.eq.s32.totalorder %s45, 2
      %p320 = por %p318, %p319
      %p321 = scmp.ne.s32.totalorder %s310, %s311
      %p322 = scmp.eq.s32.totalorder %s45, 0
      %p323 = por %p321, %p322
      %p324 = scmp.ne.s32.totalorder %s310, %s311
      %p325 = scmp.eq.s32.totalorder %s46, 2
      %p326 = por %p324, %p325
      %p328 = scmp.ne.s32.totalorder %s311, %s327
      %p329 = scmp.eq.s32.totalorder %s46, 0
      %p330 = por %p328, %p329
      %s331 = ssub.s32 %s40, %s47
      %p332 = scmp.eq.s32.totalorder %s331, 0
      %s334 = sadd.s32 %s333, 1
      %s335 = scalar_select %p332, %s333, %s334
      %p338 = pneg %p332
      %p339 = scmp.eq.s32.totalorder %s40, 2
      %p340 = por %p338, %p339
      %p341 = scmp.ne.s32.totalorder %s333, %s336
      %p342 = scmp.eq.s32.totalorder %s40, 0
      %p343 = por %p341, %p342
      %p344 = scmp.ne.s32.totalorder %s333, %s336
      %p345 = scmp.eq.s32.totalorder %s45, 2
      %p346 = por %p344, %p345
      %p347 = scmp.ne.s32.totalorder %s336, %s337
      %p348 = scmp.eq.s32.totalorder %s45, 0
      %p349 = por %p347, %p348
      %p350 = scmp.ne.s32.totalorder %s336, %s337
      %p351 = scmp.eq.s32.totalorder %s46, 2
      %p352 = por %p350, %p351
      %p354 = scmp.ne.s32.totalorder %s337, %s353
      %p355 = scmp.eq.s32.totalorder %s46, 0
      %p356 = por %p354, %p355
      %s358 = sadd.s32 %s357, 1
      %p361 = scmp.eq.s32.totalorder %s40, 2
      %p362 = scmp.ne.s32.totalorder %s357, %s359
      %p363 = scmp.eq.s32.totalorder %s40, 0
      %p364 = por %p362, %p363
      %p365 = scmp.ne.s32.totalorder %s357, %s359
      %p366 = scmp.eq.s32.totalorder %s45, 2
      %p367 = por %p365, %p366
      %p368 = scmp.ne.s32.totalorder %s359, %s360
      %p369 = scmp.eq.s32.totalorder %s45, 0
      %p370 = por %p368, %p369
      %p371 = scmp.ne.s32.totalorder %s359, %s360
      %p372 = scmp.eq.s32.totalorder %s46, 2
      %p373 = por %p371, %p372
      %p375 = scmp.ne.s32.totalorder %s360, %s374
      %p376 = scmp.eq.s32.totalorder %s46, 0
      %p377 = por %p375, %p376
      %s379 = sadd.s32 %s378, 1
      %p382 = scmp.eq.s32.totalorder %s40, 2
      %p383 = scmp.ne.s32.totalorder %s378, %s380
      %p384 = scmp.eq.s32.totalorder %s40, 0
      %p385 = por %p383, %p384
      %p386 = scmp.ne.s32.totalorder %s378, %s380
      %p387 = scmp.eq.s32.totalorder %s45, 2
      %p388 = por %p386, %p387
      %p389 = scmp.ne.s32.totalorder %s380, %s381
      %p390 = scmp.eq.s32.totalorder %s45, 0
      %p391 = por %p389, %p390
      %p392 = scmp.ne.s32.totalorder %s380, %s381
      %p393 = scmp.eq.s32.totalorder %s46, 2
      %p394 = por %p392, %p393
      %p396 = scmp.ne.s32.totalorder %s381, %s395
      %p397 = scmp.eq.s32.totalorder %s46, 0
      %p398 = por %p396, %p397
      %s400 = sadd.s32 %s399, 1
      %p403 = scmp.eq.s32.totalorder %s40, 2
      %p404 = scmp.ne.s32.totalorder %s399, %s401
      %p405 = scmp.eq.s32.totalorder %s40, 0
      %p406 = por %p404, %p405
      %p407 = scmp.ne.s32.totalorder %s399, %s401
      %p408 = scmp.eq.s32.totalorder %s45, 2
      %p409 = por %p407, %p408
      %p410 = scmp.ne.s32.totalorder %s401, %s402
      %p411 = scmp.eq.s32.totalorder %s45, 0
      %p412 = por %p410, %p411
      %p413 = scmp.ne.s32.totalorder %s401, %s402
      %p414 = scmp.eq.s32.totalorder %s46, 2
      %p415 = por %p413, %p414
      %p417 = scmp.ne.s32.totalorder %s402, %s416
      %p418 = scmp.eq.s32.totalorder %s46, 0
      %p419 = por %p417, %p418
      %p420 = scmp.le.s32.totalorder 1, %s40
      %p421 = scmp.lt.s32.totalorder %s40, 4
      %p422 = pnand %p420, %p421
      %p423 = pneg %p422
      // Predicated region
      $region9: #{tpu_custom_call.1} parent=5 // pred_check
        _
      $region10: #{tpu_custom_call.1} parent=5 // pred_check_branch
        %425 = sbr.rel (%p422) target = $region12
      $region11: #{tpu_custom_call.1} parent=5 // pred_region
        %s426 = ssub.s32 %s40, 1
        // Predicated region
        $region13: #{tpu_custom_call.1} parent=11 // pred_check
          %p427 = pneg %p61
        $region14: #{tpu_custom_call.1} parent=11 // pred_check_branch
          %429 = sbr.rel (%p427) target = $region16
        $region15: #{tpu_custom_call.1} parent=11 // pred_region
          %s431 = ssub.s32 32, 32
          %432 = vsyncadd [#allocation8], %s431
          %s434 = sshll.u32 [#allocation7], 4
          %s435 = int_to_ptr.vmem [resolvable:$true] %s434
          %437 = dma.hbm_to_vmem [thread:$0]  %s1, 32, %s435, [#allocation8]
        $region16: #{tpu_custom_call.1} parent=11 // pred_fallthru
          _
        // Predicated region
        $region17: #{tpu_custom_call.1} parent=11 // pred_check
          %p438 = pneg %p82
        $region18: #{tpu_custom_call.1} parent=11 // pred_check_branch
          %440 = sbr.rel (%p438) target = $region20
        $region19: #{tpu_custom_call.1} parent=11 // pred_region
          %s442 = ssub.s32 32, 32
          %443 = vsyncadd [#allocation11], %s442
          %s445 = sshll.u32 [#allocation10], 4
          %s446 = int_to_ptr.vmem [resolvable:$true] %s445
          %448 = dma.hbm_to_vmem [thread:$0]  %s2, 32, %s446, [#allocation11]
        $region20: #{tpu_custom_call.1} parent=11 // pred_fallthru
          _
        // Predicated region
        $region21: #{tpu_custom_call.1} parent=11 // pred_check
          %p449 = pneg %p103
        $region22: #{tpu_custom_call.1} parent=11 // pred_check_branch
          %451 = sbr.rel (%p449) target = $region24
        $region23: #{tpu_custom_call.1} parent=11 // pred_region
          _
        $region24: #{tpu_custom_call.1} parent=11 // pred_fallthru
          _
        // Predicated region
        $region25: #{tpu_custom_call.1} parent=11 // pred_check
          %p452 = pneg %p124
        $region26: #{tpu_custom_call.1} parent=11 // pred_check_branch
          %454 = sbr.rel (%p452) target = $region28
        $region27: #{tpu_custom_call.1} parent=11 // pred_region
          _
        $region28: #{tpu_custom_call.1} parent=11 // pred_fallthru
          _
        // Predicated region
        $region29: #{tpu_custom_call.1} parent=11 // pred_check
          %p455 = pneg %p145
        $region30: #{tpu_custom_call.1} parent=11 // pred_check_branch
          %457 = sbr.rel (%p455) target = $region32
        $region31: #{tpu_custom_call.1} parent=11 // pred_region
          _
        $region32: #{tpu_custom_call.1} parent=11 // pred_fallthru
          _
        // Predicated region
        $region33: #{tpu_custom_call.1} parent=11 // pred_check
          %p458 = pneg %p166
        $region34: #{tpu_custom_call.1} parent=11 // pred_check_branch
          %460 = sbr.rel (%p458) target = $region36
        $region35: #{tpu_custom_call.1} parent=11 // pred_region
          %s462 = ssub.s32 16, 16
          %463 = vsyncadd [#allocation11], %s462
          %s465 = sshll.u32 [#allocation12], 4
          %s466 = int_to_ptr.vmem [resolvable:$true] %s465
          %468 = dma.hbm_to_vmem [thread:$0]  %s7, 16, %s466, [#allocation11]
        $region36: #{tpu_custom_call.1} parent=11 // pred_fallthru
          _
        // Predicated region
        $region37: #{tpu_custom_call.1} parent=11 // pred_check
          %p469 = pneg %p187
        $region38: #{tpu_custom_call.1} parent=11 // pred_check_branch
          %471 = sbr.rel (%p469) target = $region40
        $region39: #{tpu_custom_call.1} parent=11 // pred_region
          %s473 = ssub.s32 16, 16
          %474 = vsyncadd [#allocation14], %s473
          %s476 = sshll.u32 [#allocation13], 4
          %s477 = int_to_ptr.vmem [resolvable:$true] %s476
          %479 = dma.hbm_to_vmem [thread:$0]  %s8, 16, %s477, [#allocation14]
        $region40: #{tpu_custom_call.1} parent=11 // pred_fallthru
          _
        // Predicated region
        $region41: #{tpu_custom_call.1} parent=11 // pred_check
          %p480 = pneg %p208
        $region42: #{tpu_custom_call.1} parent=11 // pred_check_branch
          %482 = sbr.rel (%p480) target = $region44
        $region43: #{tpu_custom_call.1} parent=11 // pred_region
          %s484 = ssub.s32 256, 256
          %485 = vsyncadd [#allocation14], %s484
          %s486 = sshll.u32 [#allocation15], 4
          %s487 = int_to_ptr.vmem [resolvable:$true] %s486
          %492 = dma.hbm_to_vmem [thread:$0]  %s9, 256, %s487, [#allocation14], 128, 128, 8
        $region44: #{tpu_custom_call.1} parent=11 // pred_fallthru
          _
        // Predicated region
        $region45: #{tpu_custom_call.1} parent=11 // pred_check
          %p493 = pneg %p229
        $region46: #{tpu_custom_call.1} parent=11 // pred_check_branch
          %495 = sbr.rel (%p493) target = $region48
        $region47: #{tpu_custom_call.1} parent=11 // pred_region
          _
        $region48: #{tpu_custom_call.1} parent=11 // pred_fallthru
          _
        // Predicated region
        $region49: #{tpu_custom_call.1} parent=11 // pred_check
          %p496 = pneg %p250
        $region50: #{tpu_custom_call.1} parent=11 // pred_check_branch
          %498 = sbr.rel (%p496) target = $region52
        $region51: #{tpu_custom_call.1} parent=11 // pred_region
          _
        $region52: #{tpu_custom_call.1} parent=11 // pred_fallthru
          _
        // Predicated region
        $region53: #{tpu_custom_call.1} parent=11 // pred_check
          %p499 = pneg %p271
        $region54: #{tpu_custom_call.1} parent=11 // pred_check_branch
          %501 = sbr.rel (%p499) target = $region56
        $region55: #{tpu_custom_call.1} parent=11 // pred_region
          %s503 = ssub.s32 16, 16
          %504 = vsyncadd [#allocation17], %s503
          %s506 = sshll.u32 [#allocation16], 4
          %s507 = int_to_ptr.vmem [resolvable:$true] %s506
          %509 = dma.hbm_to_vmem [thread:$0]  %s12, 16, %s507, [#allocation17]
        $region56: #{tpu_custom_call.1} parent=11 // pred_fallthru
          _
      $region12: #{tpu_custom_call.1} parent=5 // pred_fallthru
        _
      %p510 = scmp.lt.s32.totalorder %s40, 3
      // Predicated region
      $region57: #{tpu_custom_call.1} parent=5 // pred_check
        %p511 = pneg %p510
      $region58: #{tpu_custom_call.1} parent=5 // pred_check_branch
        %513 = sbr.rel (%p511) target = $region60
      $region59: #{tpu_custom_call.1} parent=5 // pred_region
        // Predicated region
        $region61: #{tpu_custom_call.1} parent=59 // pred_check
          %p514 = pneg %p291
        $region62: #{tpu_custom_call.1} parent=59 // pred_check_branch
          %516 = sbr.rel (%p514) target = $region64
        $region63: #{tpu_custom_call.1} parent=59 // pred_region
          %s517 = sand.u32 %s281, 1
          %s518 = sand.u32 %s281, 1
          %s519 = smul.addr %s518, 80
          %s520 = scalar_lea.vmem [#allocation18], %s519
          %s521 = smul.addr %s40, 8
          %s522 = scalar_lea.vmem %s13, %s521
          // Predicated region
          $region65: #{tpu_custom_call.1} parent=63 // pred_check
            _
          $region66: #{tpu_custom_call.1} parent=63 // pred_check_branch
            %524 = sbr.rel (0) target = $region68
          $region67: #{tpu_custom_call.1} parent=63 // pred_region
            // Predicated region
            $region69: #{tpu_custom_call.1} parent=67 // pred_check
              _
            $region70: #{tpu_custom_call.1} parent=67 // pred_check_branch
              %526 = sbr.rel (0) target = $region72
            $region71: #{tpu_custom_call.1} parent=67 // pred_region
              // Predicated region
              $region84: #{tpu_custom_call.1} parent=71 // pred_check
                _
              $region85: #{tpu_custom_call.1} parent=71 // pred_check_branch
                %559 = sbr.rel (0) target = $region87
              $region86: #{tpu_custom_call.1} parent=71 // pred_region
                loop: start=0, step=1, limit=1
                $region88: #{tpu_custom_call.1} parent=86 // loop_pre_header
                  _
                $region89: #{tpu_custom_call.1} parent=86 // loop_header
                  %s561 = sphi 0, %s565
                  %p562 = scmp.ge.s32.totalorder %s561, 1
                  %s566 = sphi %s522, %s522
                  %s567 = sphi %s520, %s520
                $region90: #{tpu_custom_call.1} parent=86 // loop_header_branch
                  %564 = sbr.rel (%p562) target = $region94
                $region91: #{tpu_custom_call.1} parent=86 // loop_body
                  %v568 = vld [vmem:[%s566] sm:$0xff]
                  %569 = vst [vmem:[%s567] sm:$0xff] %v568
                  %v570 = vld [vmem:[%s566 + $0x18] sm:$0xff]
                  %571 = vst [vmem:[%s567 + $0x8] sm:$0xff] %v570
                  %v572 = vld [vmem:[%s566 + $0x30] sm:$0xff]
                  %573 = vst [vmem:[%s567 + $0x10] sm:$0xff] %v572
                  %v574 = vld [vmem:[%s566 + $0x48] sm:$0xff]
                  %575 = vst [vmem:[%s567 + $0x18] sm:$0xff] %v574
                  %v576 = vld [vmem:[%s566 + $0x60] sm:$0xff]
                  %577 = vst [vmem:[%s567 + $0x20] sm:$0xff] %v576
                  %v578 = vld [vmem:[%s566 + $0x78] sm:$0xff]
                  %579 = vst [vmem:[%s567 + $0x28] sm:$0xff] %v578
                  %v580 = vld [vmem:[%s566 + $0x90] sm:$0xff]
                  %581 = vst [vmem:[%s567 + $0x30] sm:$0xff] %v580
                  %v582 = vld [vmem:[%s566 + $0xa8] sm:$0xff]
                  %583 = vst [vmem:[%s567 + $0x38] sm:$0xff] %v582
                  %v584 = vld [vmem:[%s566 + $0xc0] sm:$0xff]
                  %585 = vst [vmem:[%s567 + $0x40] sm:$0xff] %v584
                  %v586 = vld [vmem:[%s566 + $0xd8] sm:$0xff]
                  %587 = vst [vmem:[%s567 + $0x48] sm:$0xff] %v586
                $region92: #{tpu_custom_call.1} parent=86 // loop_footer
                  %s565 = sadd.s32 1, %s561
                $region93: #{tpu_custom_call.1} parent=86 // loop_footer_branch
                  %560 = sbr.rel target = $region89
                $region94: #{tpu_custom_call.1} parent=86 // loop_exit
                  _
              $region87: #{tpu_custom_call.1} parent=71 // pred_fallthru
                _
              // Predicated region
              $region95: #{tpu_custom_call.1} parent=71 // pred_check
                _
              $region96: #{tpu_custom_call.1} parent=71 // pred_check_branch
                %589 = sbr.rel target = $region98
              $region97: #{tpu_custom_call.1} parent=71 // pred_region
                _
              $region98: #{tpu_custom_call.1} parent=71 // pred_fallthru
                _
            $region72: #{tpu_custom_call.1} parent=67 // pred_fallthru
              _
            // Predicated region
            $region73: #{tpu_custom_call.1} parent=67 // pred_check
              _
            $region74: #{tpu_custom_call.1} parent=67 // pred_check_branch
              %528 = sbr.rel target = $region76
            $region75: #{tpu_custom_call.1} parent=67 // pred_region
              loop: start=0, step=1, limit=1
              $region77: #{tpu_custom_call.1} parent=75 // loop_pre_header
                _
              $region78: #{tpu_custom_call.1} parent=75 // loop_header
                %s531 = sphi 0, %s535
                %p532 = scmp.ge.s32.totalorder %s531, 1
                %s536 = sphi %s522, %s522
                %s537 = sphi %s520, %s520
              $region79: #{tpu_custom_call.1} parent=75 // loop_header_branch
                %534 = sbr.rel (%p532) target = $region83
              $region80: #{tpu_custom_call.1} parent=75 // loop_body
                %v538 = vld [vmem:[%s536] sm:$0xff]
                %539 = vst [vmem:[%s537] sm:$0xff] %v538
                %v540 = vld [vmem:[%s536 + $0x18] sm:$0xff]
                %541 = vst [vmem:[%s537 + $0x8] sm:$0xff] %v540
                %v542 = vld [vmem:[%s536 + $0x30] sm:$0xff]
                %543 = vst [vmem:[%s537 + $0x10] sm:$0xff] %v542
                %v544 = vld [vmem:[%s536 + $0x48] sm:$0xff]
                %545 = vst [vmem:[%s537 + $0x18] sm:$0xff] %v544
                %v546 = vld [vmem:[%s536 + $0x60] sm:$0xff]
                %547 = vst [vmem:[%s537 + $0x20] sm:$0xff] %v546
                %v548 = vld [vmem:[%s536 + $0x78] sm:$0xff]
                %549 = vst [vmem:[%s537 + $0x28] sm:$0xff] %v548
                %v550 = vld [vmem:[%s536 + $0x90] sm:$0xff]
                %551 = vst [vmem:[%s537 + $0x30] sm:$0xff] %v550
                %v552 = vld [vmem:[%s536 + $0xa8] sm:$0xff]
                %553 = vst [vmem:[%s537 + $0x38] sm:$0xff] %v552
                %v554 = vld [vmem:[%s536 + $0xc0] sm:$0xff]
                %555 = vst [vmem:[%s537 + $0x40] sm:$0xff] %v554
                %v556 = vld [vmem:[%s536 + $0xd8] sm:$0xff]
                %557 = vst [vmem:[%s537 + $0x48] sm:$0xff] %v556
              $region81: #{tpu_custom_call.1} parent=75 // loop_footer
                %s535 = sadd.s32 1, %s531
              $region82: #{tpu_custom_call.1} parent=75 // loop_footer_branch
                %530 = sbr.rel target = $region78
              $region83: #{tpu_custom_call.1} parent=75 // loop_exit
                _
            $region76: #{tpu_custom_call.1} parent=67 // pred_fallthru
              _
          $region68: #{tpu_custom_call.1} parent=63 // pred_fallthru
            _
          %590 = vnop
        $region64: #{tpu_custom_call.1} parent=59 // pred_fallthru
          _
        // Predicated region
        $region99: #{tpu_custom_call.1} parent=59 // pred_check
          %p591 = pneg %p317
        $region100: #{tpu_custom_call.1} parent=59 // pred_check_branch
          %593 = sbr.rel (%p591) target = $region102
        $region101: #{tpu_custom_call.1} parent=59 // pred_region
          %p594 = scmp.lt.s32.totalorder %s40, 2
          %s595 = scalar_select %p594, %s40, 2
          %s596 = scalar_lea.vmem %s14, %s595
        $region102: #{tpu_custom_call.1} parent=59 // pred_fallthru
          _
      $region60: #{tpu_custom_call.1} parent=5 // pred_fallthru
        _
      %p597 = scmp.le.s32.totalorder 1, %s40
      %p598 = scmp.lt.s32.totalorder %s40, 4
      %p599 = pnand %p597, %p598
      %p600 = pneg %p599
      // Predicated region
      $region103: #{tpu_custom_call.1} parent=5 // pred_check
        _
      $region104: #{tpu_custom_call.1} parent=5 // pred_check_branch
        %602 = sbr.rel (%p599) target = $region106
      $region105: #{tpu_custom_call.1} parent=5 // pred_region
        %s603 = ssub.s32 %s40, 1
        // Predicated region
        $region107: #{tpu_custom_call.1} parent=105 // pred_check
          %p604 = pneg %p61
        $region108: #{tpu_custom_call.1} parent=105 // pred_check_branch
          %606 = sbr.rel (%p604) target = $region110
        $region109: #{tpu_custom_call.1} parent=105 // pred_region
          %607 = dma.done [#allocation8], 32
        $region110: #{tpu_custom_call.1} parent=105 // pred_fallthru
          _
        // Predicated region
        $region111: #{tpu_custom_call.1} parent=105 // pred_check
          %p608 = pneg %p82
        $region112: #{tpu_custom_call.1} parent=105 // pred_check_branch
          %610 = sbr.rel (%p608) target = $region114
        $region113: #{tpu_custom_call.1} parent=105 // pred_region
          %611 = dma.done [#allocation11], 32
        $region114: #{tpu_custom_call.1} parent=105 // pred_fallthru
          _
        // Predicated region
        $region115: #{tpu_custom_call.1} parent=105 // pred_check
          %p612 = pneg %p166
        $region116: #{tpu_custom_call.1} parent=105 // pred_check_branch
          %614 = sbr.rel (%p612) target = $region118
        $region117: #{tpu_custom_call.1} parent=105 // pred_region
          %615 = dma.done [#allocation11], 16
        $region118: #{tpu_custom_call.1} parent=105 // pred_fallthru
          _
        // Predicated region
        $region119: #{tpu_custom_call.1} parent=105 // pred_check
          %p616 = pneg %p187
        $region120: #{tpu_custom_call.1} parent=105 // pred_check_branch
          %618 = sbr.rel (%p616) target = $region122
        $region121: #{tpu_custom_call.1} parent=105 // pred_region
          %619 = dma.done [#allocation14], 16
        $region122: #{tpu_custom_call.1} parent=105 // pred_fallthru
          _
        // Predicated region
        $region123: #{tpu_custom_call.1} parent=105 // pred_check
          %p620 = pneg %p208
        $region124: #{tpu_custom_call.1} parent=105 // pred_check_branch
          %622 = sbr.rel (%p620) target = $region126
        $region125: #{tpu_custom_call.1} parent=105 // pred_region
          %623 = dma.done [#allocation14], 256
        $region126: #{tpu_custom_call.1} parent=105 // pred_fallthru
          _
        // Predicated region
        $region127: #{tpu_custom_call.1} parent=105 // pred_check
          %p624 = pneg %p271
        $region128: #{tpu_custom_call.1} parent=105 // pred_check_branch
          %626 = sbr.rel (%p624) target = $region130
        $region129: #{tpu_custom_call.1} parent=105 // pred_region
          %627 = dma.done [#allocation17], 16
        $region130: #{tpu_custom_call.1} parent=105 // pred_fallthru
          _
        %s628 = sand.u32 %s284, 1
        %s629 = sand.u32 %s284, 1
        %s630 = smul.addr %s629, 80
        %s631 = scalar_lea.vmem [#allocation18], %s630
        // Predicated region
        $region131: #{tpu_custom_call.1} parent=105 // pred_check
          %p632 = pneg %p297
        $region132: #{tpu_custom_call.1} parent=105 // pred_check_branch
          %634 = sbr.rel (%p632) target = $region134
        $region133: #{tpu_custom_call.1} parent=105 // pred_region
          _
        $region134: #{tpu_custom_call.1} parent=105 // pred_fallthru
          _
        %p635 = pneg %p61
        %p636 = pneg %p58
        %p637 = pneg %p82
        %p638 = pneg %p79
        %p639 = pneg %p103
        %p640 = pneg %p100
        %p641 = pneg %p124
        %p642 = pneg %p121
        %p643 = pneg %p145
        %p644 = pneg %p142
        %p645 = pneg %p166
        %p646 = pneg %p163
        %p647 = pneg %p187
        %p648 = pneg %p184
        %p649 = pneg %p208
        %p650 = pneg %p205
        %p651 = pneg %p229
        %p652 = pneg %p226
        %p653 = pneg %p250
        %p654 = pneg %p247
        %p655 = pneg %p271
        %p656 = pneg %p268
        %s657 = sand.u32 %s284, 1
        %s658 = sand.u32 %s284, 1
        %s659 = smul.addr %s658, 80
        %s660 = scalar_lea.vmem [#allocation18], %s659
        %p661 = pneg %p297
        %p662 = pneg %p294
        %p663 = scmp.lt.s32.totalorder %s45, 2
        %s664 = scalar_select %p663, %s45, 2
        %s665 = scalar_lea.vmem %s14, %s664
        %p666 = pneg %p323
        %p667 = pneg %p320
        %p668 = pneg %p349
        %p669 = pneg %p346
        %s670 = sand.u32 %s336, 1
        %s671 = scalar_lea.sflag [#allocation9], %s670
        %s672 = sand.u32 %s336, 1
        %s673 = smul.addr %s672, 2
        %s674 = scalar_lea.vmem [#allocation19], %s673
        %p675 = pneg %p370
        %p676 = pneg %p367
        %p677 = pneg %p391
        %p678 = pneg %p388
        %p679 = pneg %p412
        %p680 = pneg %p409
        %p681 = scmp.lt.s32.totalorder %s45, 2
        %s682 = scalar_select %p681, %s45, 2
        %s683 = scalar_lea.vmem %s14, %s682
        %p684 = scmp.eq.s32.totalorder %s45, 0
        // Predicated region
        $region135: #{tpu_custom_call.1} parent=105 // pred_check
          %p685 = pneg %p684
        $region136: #{tpu_custom_call.1} parent=105 // pred_check_branch
          %687 = sbr.rel (%p685) target = $region138
        $region137: #{tpu_custom_call.1} parent=105 // pred_region
          %s688 = sld [smem:[#allocation6]]
          %s689 = sld [smem:[#allocation6 + $0x1]]
          %s690 = scalar_lea.vmem %s4, %s688
          %p692 = scmp.lt.u32.totalorder 1, 8
          %p693 = pneg %p692
          // Predicated region
          $region139: #{tpu_custom_call.1} parent=137 // pred_check
            _
          $region140: #{tpu_custom_call.1} parent=137 // pred_check_branch
            %695 = sbr.rel (%p692) target = $region142
          $region141: #{tpu_custom_call.1} parent=137 // pred_region
            %s710 = sand.u32 1, 7
            %p711 = scmp.eq.s32.totalorder %s710, 0
            %p712 = pneg %p711
            // Predicated region
            $region154: #{tpu_custom_call.1} parent=141 // pred_check
              _
            $region155: #{tpu_custom_call.1} parent=141 // pred_check_branch
              %714 = sbr.rel (%p711) target = $region157
            $region156: #{tpu_custom_call.1} parent=141 // pred_region
              %s715 = sand.u32 1, 7
              %s716 = ssub.s32 1, %s715
              %s717 = scalar_lea.vmem %s690, %s716
              %s718 = ssub.s32 1, %s715
              %s719 = scalar_lea.vmem [#allocation2], %s718
              %s720 = sshllo.u32 0, %s715
              loop: start=0, step=1, limit=1
              $region158: #{tpu_custom_call.1} parent=156 // loop_pre_header
                _
              $region159: #{tpu_custom_call.1} parent=156 // loop_header
                %s722 = sphi 0, %s726
                %p723 = scmp.ge.s32.totalorder %s722, 1
                %s727 = sphi %s717, %s717
                %s728 = sphi %s719, %s719
              $region160: #{tpu_custom_call.1} parent=156 // loop_header_branch
                %725 = sbr.rel (%p723) target = $region164
              $region161: #{tpu_custom_call.1} parent=156 // loop_body
                %v729 = vld [vmem:[%s727] sm:%s720]
                %730 = vst [vmem:[%s728] sm:%s720] %v729
              $region162: #{tpu_custom_call.1} parent=156 // loop_footer
                %s726 = sadd.s32 1, %s722
              $region163: #{tpu_custom_call.1} parent=156 // loop_footer_branch
                %721 = sbr.rel target = $region159
              $region164: #{tpu_custom_call.1} parent=156 // loop_exit
                _
            $region157: #{tpu_custom_call.1} parent=141 // pred_fallthru
              _
          $region142: #{tpu_custom_call.1} parent=137 // pred_fallthru
            _
          // Predicated region
          $region143: #{tpu_custom_call.1} parent=137 // pred_check
            %p696 = pneg %p692
          $region144: #{tpu_custom_call.1} parent=137 // pred_check_branch
            %698 = sbr.rel (%p696) target = $region146
          $region145: #{tpu_custom_call.1} parent=137 // pred_region
            %s699 = sshllo.u32 0, 1
            loop: start=0, step=1, limit=1
            $region147: #{tpu_custom_call.1} parent=145 // loop_pre_header
              _
            $region148: #{tpu_custom_call.1} parent=145 // loop_header
              %s701 = sphi 0, %s705
              %p702 = scmp.ge.s32.totalorder %s701, 1
              %s706 = sphi %s690, %s690
              %s707 = sphi [#allocation2], [#allocation2]
            $region149: #{tpu_custom_call.1} parent=145 // loop_header_branch
              %704 = sbr.rel (%p702) target = $region153
            $region150: #{tpu_custom_call.1} parent=145 // loop_body
              %v708 = vld [vmem:[%s706] sm:%s699]
              %709 = vst [vmem:[%s707] sm:%s699] %v708
            $region151: #{tpu_custom_call.1} parent=145 // loop_footer
              %s705 = sadd.s32 1, %s701
            $region152: #{tpu_custom_call.1} parent=145 // loop_footer_branch
              %700 = sbr.rel target = $region148
            $region153: #{tpu_custom_call.1} parent=145 // loop_exit
              _
          $region146: #{tpu_custom_call.1} parent=137 // pred_fallthru
            _
          // Predicated region
          $region165: #{tpu_custom_call.1} parent=137 // pred_check
            _
          $region166: #{tpu_custom_call.1} parent=137 // pred_check_branch
            %733 = sbr.rel (0) target = $region168
          $region167: #{tpu_custom_call.1} parent=137 // pred_region
            %734 = vsyncadd [#allocation4], 16
          $region168: #{tpu_custom_call.1} parent=137 // pred_fallthru
            _
          %s735 = scalar_lea.vmem %s4, %s689
          %s736 = scalar_lea.vmem [#allocation2], 1
          %s737 = scalar_lea.sflag [#allocation4], 1
          %p739 = scmp.lt.u32.totalorder 1, 8
          %p740 = pneg %p739
          // Predicated region
          $region169: #{tpu_custom_call.1} parent=137 // pred_check
            _
          $region170: #{tpu_custom_call.1} parent=137 // pred_check_branch
            %742 = sbr.rel (%p739) target = $region172
          $region171: #{tpu_custom_call.1} parent=137 // pred_region
            %s757 = sand.u32 1, 7
            %p758 = scmp.eq.s32.totalorder %s757, 0
            %p759 = pneg %p758
            // Predicated region
            $region184: #{tpu_custom_call.1} parent=171 // pred_check
              _
            $region185: #{tpu_custom_call.1} parent=171 // pred_check_branch
              %761 = sbr.rel (%p758) target = $region187
            $region186: #{tpu_custom_call.1} parent=171 // pred_region
              %s762 = sand.u32 1, 7
              %s763 = ssub.s32 1, %s762
              %s764 = scalar_lea.vmem %s735, %s763
              %s765 = ssub.s32 1, %s762
              %s766 = scalar_lea.vmem %s736, %s765 [#allocation2]
              %s767 = sshllo.u32 0, %s762
              loop: start=0, step=1, limit=1
              $region188: #{tpu_custom_call.1} parent=186 // loop_pre_header
                _
              $region189: #{tpu_custom_call.1} parent=186 // loop_header
                %s769 = sphi 0, %s773
                %p770 = scmp.ge.s32.totalorder %s769, 1
                %s774 = sphi %s764, %s764
                %s775 = sphi %s766, %s766
              $region190: #{tpu_custom_call.1} parent=186 // loop_header_branch
                %772 = sbr.rel (%p770) target = $region194
              $region191: #{tpu_custom_call.1} parent=186 // loop_body
                %v776 = vld [vmem:[%s774] sm:%s767]
                %777 = vst [vmem:[%s775] sm:%s767] %v776
              $region192: #{tpu_custom_call.1} parent=186 // loop_footer
                %s773 = sadd.s32 1, %s769
              $region193: #{tpu_custom_call.1} parent=186 // loop_footer_branch
                %768 = sbr.rel target = $region189
              $region194: #{tpu_custom_call.1} parent=186 // loop_exit
                _
            $region187: #{tpu_custom_call.1} parent=171 // pred_fallthru
              _
          $region172: #{tpu_custom_call.1} parent=137 // pred_fallthru
            _
          // Predicated region
          $region173: #{tpu_custom_call.1} parent=137 // pred_check
            %p743 = pneg %p739
          $region174: #{tpu_custom_call.1} parent=137 // pred_check_branch
            %745 = sbr.rel (%p743) target = $region176
          $region175: #{tpu_custom_call.1} parent=137 // pred_region
            %s746 = sshllo.u32 0, 1
            loop: start=0, step=1, limit=1
            $region177: #{tpu_custom_call.1} parent=175 // loop_pre_header
              _
            $region178: #{tpu_custom_call.1} parent=175 // loop_header
              %s748 = sphi 0, %s752
              %p749 = scmp.ge.s32.totalorder %s748, 1
              %s753 = sphi %s735, %s735
              %s754 = sphi %s736, %s736
            $region179: #{tpu_custom_call.1} parent=175 // loop_header_branch
              %751 = sbr.rel (%p749) target = $region183
            $region180: #{tpu_custom_call.1} parent=175 // loop_body
              %v755 = vld [vmem:[%s753] sm:%s746]
              %756 = vst [vmem:[%s754] sm:%s746] %v755
            $region181: #{tpu_custom_call.1} parent=175 // loop_footer
              %s752 = sadd.s32 1, %s748
            $region182: #{tpu_custom_call.1} parent=175 // loop_footer_branch
              %747 = sbr.rel target = $region178
            $region183: #{tpu_custom_call.1} parent=175 // loop_exit
              _
          $region176: #{tpu_custom_call.1} parent=137 // pred_fallthru
            _
          // Predicated region
          $region195: #{tpu_custom_call.1} parent=137 // pred_check
            _
          $region196: #{tpu_custom_call.1} parent=137 // pred_check_branch
            %780 = sbr.rel (0) target = $region198
          $region197: #{tpu_custom_call.1} parent=137 // pred_region
            %781 = vsyncadd %s737, 16
          $region198: #{tpu_custom_call.1} parent=137 // pred_fallthru
            _
          %s782 = smul.u32 1, 1
          %s783 = sshll.u32 %s782, 4
          %784 = dma.done [#allocation4], %s783
          %s785 = sshll.u32 %s782, 4
          %786 = dma.done %s737, %s785
          %v787 = vld [vmem:[#allocation2] sm:$0x3]
          %v788 = vld [vmem:[#allocation7] sm:$0x3]
          %v789 = vld [vmem:[#allocation10] sm:$0x3]
          %v790 = vld [vmem:[%s3] sm:$0xff]
          %v791 = vld [vmem:[%s3 + $0x8] sm:$0xff]
          %v792 = vld [vmem:[%s3 + $0x10] sm:$0xff]
          %v793 = vld [vmem:[%s3 + $0x18] sm:$0xff]
          %v794 = vld [vmem:[%s5] sm:$0xff]
          %v795 = vld [vmem:[%s5 + $0x8] sm:$0xff]
          %v796 = vld [vmem:[%s5 + $0x10] sm:$0xff]
          %v797 = vld [vmem:[%s5 + $0x18] sm:$0xff]
          %vm798 = vcmask 261120
          %v800 = vsel %vm798, %v788, 0
          %802 = vmatprep.subr.mxu0 0.0
          %803 = vmatpush1.msra.mxu0 %v794
          %804 = vmatprep.subr.mxu0 0.0
          %805 = vmatpush1.msra.mxu0 %v795
          %806 = vmatprep.subr.mxu0 0.0
          %807 = vmatpush1.msra.mxu0 %v796
          %808 = vmatprep.subr.mxu0 0.0
          %809 = vmatpush1.msra.mxu0 %v797
          %810 = vmatprep.subr.mxu0 0.0
          %811 = vmatpush1.msra.mxu0 0.0
          %812 = vmatprep.subr.mxu0 0.0
          %813 = vmatpush1.msra.mxu0 0.0
          %814 = vmatprep.subr.mxu0 0.0
          %815 = vmatpush1.msra.mxu0 0.0
          %816 = vmatprep.subr.mxu0 0.0
          %817 = vmatpush1.msra.mxu0 0.0
          %818 = vmatprep.subr.mxu0 0.0
          %819 = vmatpush1.msra.mxu0 0.0
          %820 = vmatprep.subr.mxu0 0.0
          %821 = vmatpush1.msra.mxu0 0.0
          %822 = vmatprep.subr.mxu0 0.0
          %823 = vmatpush1.msra.mxu0 0.0
          %824 = vmatprep.subr.mxu0 0.0
          %825 = vmatpush1.msra.mxu0 0.0
          %826 = vmatprep.subr.mxu0 0.0
          %827 = vmatpush1.msra.mxu0 0.0
          %828 = vmatprep.subr.mxu0 0.0
          %829 = vmatpush1.msra.mxu0 0.0
          %830 = vmatprep.subr.mxu0 0.0
          %831 = vmatpush1.msra.mxu0 0.0
          %832 = vmatprep.subr.mxu0 0.0
          %833 = vmatpush1.msra.mxu0 0.0
          %834 = vmatprep.subr.mxu0 0.0
          %835 = vmatpush1.msra.mxu0 0.0
          %836 = vmatprep.subr.mxu0 0.0
          %837 = vmatpush1.msra.mxu0 0.0
          %838 = vmatprep.subr.mxu0 0.0
          %839 = vmatpush1.msra.mxu0 0.0
          %840 = vmatprep.subr.mxu0 0.0
          %841 = vmatpush1.msra.mxu0 0.0
          %842 = vmatprep.subr.mxu0 0.0
          %843 = vmatpush1.msra.mxu0 0.0
          %844 = vmatprep.subr.mxu0 0.0
          %845 = vmatpush1.msra.mxu0 0.0
          %846 = vmatprep.subr.mxu0 0.0
          %847 = vmatpush1.msra.mxu0 0.0
          %848 = vmatprep.subr.mxu0 0.0
          %849 = vmatpush1.msra.mxu0 0.0
          %850 = vmatprep.subr.mxu0 0.0
          %851 = vmatpush1.msra.mxu0 0.0
          %852 = vmatprep.subr.mxu0 0.0
          %853 = vmatpush1.msra.mxu0 0.0
          %854 = vmatprep.subr.mxu0 0.0
          %855 = vmatpush1.msra.mxu0 0.0
          %856 = vmatprep.subr.mxu0 0.0
          %857 = vmatpush1.msra.mxu0 0.0
          %858 = vmatprep.subr.mxu0 0.0
          %859 = vmatpush1.msra.mxu0 0.0
          %860 = vmatprep.subr.mxu0 0.0
          %861 = vmatpush1.msra.mxu0 0.0
          %862 = vmatprep.subr.mxu0 0.0
          %863 = vmatpush1.msra.mxu0 0.0
          %864 = vmatprep.subr.mxu0 0.0
          %865 = vmatpush1.msra.mxu0 0.0
          %866 = vmatprep.mubr.f32.mxu0 0.0
          %867 = vmatmul.mubr.f32.gmra.mrb[0].mxu0 %v800
          %v868 = vpop.f32.mrb[0].mxu0
          %v869 = vadd.f32 0.0, %v868
          %v870 = vpop.f32.mrb[0].mxu0
          %871 = vdwg.mxu0
          %v872 = vld [vmem:[%s6] sm:$0xff]
          %v873 = vld [vmem:[%s6 + $0x8] sm:$0xff]
          %v874 = vld [vmem:[%s6 + $0x10] sm:$0xff]
          %v875 = vld [vmem:[%s6 + $0x18] sm:$0xff]
          %v877 = vsel %vm798, %v790, 0
          %v880 = vsel %vm798, %v791, 0
          %v883 = vsel %vm798, %v792, 0
          %v886 = vsel %vm798, %v793, 0
          %888 = vmatprep.subr.mxu0 0.0
          %889 = vmatpush1.msra.mxu0 %v872
          %890 = vmatprep.subr.mxu0 0.0
          %891 = vmatpush1.msra.mxu0 %v873
          %892 = vmatprep.subr.mxu0 0.0
          %893 = vmatpush1.msra.mxu0 %v874
          %894 = vmatprep.subr.mxu0 0.0
          %895 = vmatpush1.msra.mxu0 %v875
          %896 = vmatprep.subr.mxu0 0.0
          %897 = vmatpush1.msra.mxu0 0.0
          %898 = vmatprep.subr.mxu0 0.0
          %899 = vmatpush1.msra.mxu0 0.0
          %900 = vmatprep.subr.mxu0 0.0
          %901 = vmatpush1.msra.mxu0 0.0
          %902 = vmatprep.subr.mxu0 0.0
          %903 = vmatpush1.msra.mxu0 0.0
          %904 = vmatprep.subr.mxu0 0.0
          %905 = vmatpush1.msra.mxu0 0.0
          %906 = vmatprep.subr.mxu0 0.0
          %907 = vmatpush1.msra.mxu0 0.0
          %908 = vmatprep.subr.mxu0 0.0
          %909 = vmatpush1.msra.mxu0 0.0
          %910 = vmatprep.subr.mxu0 0.0
          %911 = vmatpush1.msra.mxu0 0.0
          %912 = vmatprep.subr.mxu0 0.0
          %913 = vmatpush1.msra.mxu0 0.0
          %914 = vmatprep.subr.mxu0 0.0
          %915 = vmatpush1.msra.mxu0 0.0
          %916 = vmatprep.subr.mxu0 0.0
          %917 = vmatpush1.msra.mxu0 0.0
          %918 = vmatprep.subr.mxu0 0.0
          %919 = vmatpush1.msra.mxu0 0.0
          %920 = vmatprep.subr.mxu0 0.0
          %921 = vmatpush1.msra.mxu0 0.0
          %922 = vmatprep.subr.mxu0 0.0
          %923 = vmatpush1.msra.mxu0 0.0
          %924 = vmatprep.subr.mxu0 0.0
          %925 = vmatpush1.msra.mxu0 0.0
          %926 = vmatprep.subr.mxu0 0.0
          %927 = vmatpush1.msra.mxu0 0.0
          %928 = vmatprep.subr.mxu0 0.0
          %929 = vmatpush1.msra.mxu0 0.0
          %930 = vmatprep.subr.mxu0 0.0
          %931 = vmatpush1.msra.mxu0 0.0
          %932 = vmatprep.subr.mxu0 0.0
          %933 = vmatpush1.msra.mxu0 0.0
          %934 = vmatprep.subr.mxu0 0.0
          %935 = vmatpush1.msra.mxu0 0.0
          %936 = vmatprep.subr.mxu0 0.0
          %937 = vmatpush1.msra.mxu0 0.0
          %938 = vmatprep.subr.mxu0 0.0
          %939 = vmatpush1.msra.mxu0 0.0
          %940 = vmatprep.subr.mxu0 0.0
          %941 = vmatpush1.msra.mxu0 0.0
          %942 = vmatprep.subr.mxu0 0.0
          %943 = vmatpush1.msra.mxu0 0.0
          %944 = vmatprep.subr.mxu0 0.0
          %945 = vmatpush1.msra.mxu0 0.0
          %946 = vmatprep.subr.mxu0 0.0
          %947 = vmatpush1.msra.mxu0 0.0
          %948 = vmatprep.subr.mxu0 0.0
          %949 = vmatpush1.msra.mxu0 0.0
          %950 = vmatprep.subr.mxu0 0.0
          %951 = vmatpush1.msra.mxu0 0.0
          %952 = vmatprep.mubr.f32.mxu0 0.0
          %953 = vmatmul.mubr.f32.gmra.mrb[0].mxu0 %v877
          %v954 = vpop.f32.mrb[0].mxu0
          %v955 = vadd.f32 0.0, %v954
          %v956 = vpop.f32.mrb[0].mxu0
          %957 = vmatprep.mubr.f32.mxu0 0.0
          %958 = vmatmul.mubr.f32.gmra.mrb[0].mxu0 %v880
          %v959 = vpop.f32.mrb[0].mxu0
          %v960 = vadd.f32 0.0, %v959
          %v961 = vpop.f32.mrb[0].mxu0
          %962 = vmatprep.mubr.f32.mxu0 0.0
          %963 = vmatmul.mubr.f32.gmra.mrb[0].mxu0 %v883
          %v964 = vpop.f32.mrb[0].mxu0
          %v965 = vadd.f32 0.0, %v964
          %v966 = vpop.f32.mrb[0].mxu0
          %967 = vmatprep.mubr.f32.mxu0 0.0
          %968 = vmatmul.mubr.f32.gmra.mrb[0].mxu0 %v886
          %v969 = vpop.f32.mrb[0].mxu0
          %v970 = vadd.f32 0.0, %v969
          %v971 = vpop.f32.mrb[0].mxu0
          %972 = vdwg.mxu0
          %v975 = vunpack.c.l.s4 1966171168
          %v976 = vunpack.c.0.s8 %v975
          %v977 = vlaneseq
          %v978 = vshrl.u32 %v977, 7
          %v979 = vsub.s32 %v976, %v978
          %v980 = vrot.slane %v869, %v979
          %v981 = vcombine.high %v980, %v980
          %v983 = vunpack.c.l.s4 1966171168
          %v984 = vunpack.c.0.s8 %v983
          %v985 = vlaneseq
          %v986 = vshrl.u32 %v985, 7
          %v987 = vsub.s32 %v984, %v986
          %v988 = vrot.slane %v980, %v987
          %v990 = vunpack.c.l.s4 1966171168
          %v991 = vunpack.c.0.s8 %v990
          %v992 = vlaneseq
          %v993 = vshrl.u32 %v992, 7
          %v994 = vsub.s32 %v991, %v993
          %v995 = vrot.slane %v981, %v994
          %v996 = vlaneseq
          %v997 = vshrl.u32 %v996, 7
          %v998 = vsub.s32 0, %v997
          %v999 = vrot.slane %v988, %v998
          %v1000 = vlaneseq
          %v1001 = vshrl.u32 %v1000, 7
          %v1002 = vsub.s32 0, %v1001
          %v1003 = vrot.slane %v995, %v1002
          %v1006 = vadd.f32 %v955, %v999
          %v1007 = vadd.f32 %v960, %v999
          %v1008 = vadd.f32 %v965, %v1003
          %v1009 = vadd.f32 %v970, %v1003
          %v1010 = vld [vmem:[#allocation12] sm:$0x1]
          %v1012 = vlaneseq
          %v1013 = vshrl.u32 %v1012, 7
          %v1014 = vsub.s32 0, %v1013
          %v1015 = vrot.slane %v1010, %v1014
          %v1017 = vadd.f32 %v1006, %v1015
          %v1018 = vadd.f32 %v1007, %v1015
          %v1019 = vadd.f32 %v1008, %v1015
          %v1020 = vadd.f32 %v1009, %v1015
          %v1021 = vtanh.pop %v1017
          %v1022 = vtanh.pop %v1018
          %v1023 = vtanh.pop %v1019
          %v1024 = vtanh.pop %v1020
          %v1025 = vld [vmem:[#allocation13] sm:$0x1]
          %v1027 = vlaneseq
          %v1028 = vshrl.u32 %v1027, 7
          %v1029 = vsub.s32 0, %v1028
          %v1030 = vrot.slane %v1025, %v1029
          %v1032 = vmul.f32 %v1021, %v1030
          %v1033 = vmul.f32 %v1022, %v1030
          %v1034 = vmul.f32 %v1023, %v1030
          %v1035 = vmul.f32 %v1024, %v1030
          %v1036 = vsel %vm798, %v1032, 0.0
          %1037 = vadd.xlane.f32.xlu0 %v1036
          %v1038 = vpop.xlane.xlu0 %1037
          %v1039 = vsel %vm798, %v1033, 0.0
          %1040 = vadd.xlane.f32.xlu0 %v1039
          %v1041 = vpop.xlane.xlu0 %1040
          %v1042 = vsel %vm798, %v1034, 0.0
          %1043 = vadd.xlane.f32.xlu0 %v1042
          %v1044 = vpop.xlane.xlu0 %1043
          %v1045 = vsel %vm798, %v1035, 0.0
          %1046 = vadd.xlane.f32.xlu0 %v1045
          %v1047 = vpop.xlane.xlu0 %1046
          %v1048 = vlaneseq
          %v1049 = vand.u32 %v1048, 127
          %vm1050 = vcmp.lt.s32.totalorder %v1049, 12
          %v1055 = vlaneseq
          %v1056 = vshrl.u32 %v1055, 7
          %v1057 = vsub.s32 %v1049, %v1056
          %v1058 = vrot.slane %v1038, %v1057
          %v1059 = vadd.s32 %v1049, 4294967288
          %v1060 = vlaneseq
          %v1061 = vshrl.u32 %v1060, 7
          %v1062 = vsub.s32 %v1059, %v1061
          %v1063 = vrot.slane %v1041, %v1062
          %vm1064 = vcmask 130112
          %v1065 = vsel %vm1064, %v1063, %v1058
          %v1066 = vlaneseq
          %v1067 = vshrl.u32 %v1066, 7
          %v1068 = vsub.s32 %v1049, %v1067
          %v1069 = vrot.slane %v1044, %v1068
          %v1070 = vlaneseq
          %v1071 = vshrl.u32 %v1070, 7
          %v1072 = vsub.s32 %v1059, %v1071
          %v1073 = vrot.slane %v1047, %v1072
          %v1074 = vsel %vm1064, %v1073, %v1069
          %vm1075 = vcmask 1041409
          %v1076 = vsel %vm1075, %v1074, %v1065
          %v1078 = vsel %vm1050, %v1076, -1e+30
          %vm1079 = vcmask 123904
          %v1080 = vsel %vm1079, %v1078, -inf
          %1081 = vmax.xlane.f32.xlu0 %v1080
          %v1082 = vpop.xlane.xlu0 %1081
          %v1083 = vsub.f32 %v1078, %v1082
          %v1084 = vmul.f32 %v1083, 1.442695
          %v1085 = vpow.pop %v1084
          %v1086 = vsel %vm1079, %v1085, 0.0
          %1087 = vadd.xlane.f32.xlu0 %v1086
          %v1088 = vpop.xlane.xlu0 %1087
          %v1089 = vrcp.pop %v1088
          %v1090 = vmul.f32 %v1085, %v1089
          %v1091 = vlaneseq
          %v1092 = vshrl.u32 %v1091, 7
          %v1093 = vsub.s32 0, %v1092
          %v1094 = vrot.slane %v1090, %v1093
          %1096 = vbcast.lane.b32.xlu0 %v1094, 256
          %v1097 = vpop.permute.xlu0 %1096
          %s1099 = sor.u32 256, 8
          %1100 = vbcast.lane.b32.xlu0 %v1094, %s1099
          %v1101 = vpop.permute.xlu0 %1100
          %v1102 = vlaneseq
          %v1103 = vshrl.u32 %v1102, 7
          %v1104 = vsub.s32 1, %v1103
          %v1105 = vrot.slane %v1090, %v1104
          %1107 = vbcast.lane.b32.xlu0 %v1105, 256
          %v1108 = vpop.permute.xlu0 %1107
          %s1110 = sor.u32 256, 8
          %1111 = vbcast.lane.b32.xlu0 %v1105, %s1110
          %v1112 = vpop.permute.xlu0 %1111
          %v1113 = vmul.f32 %v1097, %v790
          %v1114 = vmul.f32 %v1101, %v791
          %v1115 = vmul.f32 %v1108, %v792
          %v1116 = vmul.f32 %v1112, %v793
          %v1117 = vsel %vm798, %v1113, 0.0
          %v1118 = vsel %vm798, %v1114, 0.0
          %v1119 = vadd.f32 %v1117, %v1118
          %v1120 = vrot.slane %v1119, 4
          %v1121 = vadd.f32 %v1119, %v1120
          %v1122 = vrot.slane %v1121, 2
          %v1123 = vadd.f32 %v1121, %v1122
          %v1124 = vrot.slane %v1123, 1
          %v1125 = vadd.f32 %v1123, %v1124
          %v1126 = vsel %vm798, %v1115, 0.0
          %v1127 = vsel %vm798, %v1116, 0.0
          %v1128 = vadd.f32 %v1126, %v1127
          %v1129 = vrot.slane %v1128, 4
          %v1130 = vadd.f32 %v1128, %v1129
          %v1131 = vrot.slane %v1130, 2
          %v1132 = vadd.f32 %v1130, %v1131
          %v1133 = vrot.slane %v1132, 1
          %v1134 = vadd.f32 %v1132, %v1133
          %v1135 = vld [vmem:[#allocation15] sm:$0xff]
          %v1136 = vld [vmem:[#allocation15 + $0x8] sm:$0xff]
          %v1137 = vld [vmem:[%s10] sm:$0xff]
          %v1138 = vld [vmem:[%s10 + $0x8] sm:$0xff]
          %v1139 = vld [vmem:[%s10 + $0x10] sm:$0xff]
          %v1140 = vld [vmem:[%s10 + $0x18] sm:$0xff]
          %v1143 = vsel %vm1075, %v1134, %v1125
          %v1144 = vsel %vm798, %v1143, 0
          %1146 = vmatprep.subr.mxu0 0.0
          %1147 = vmatpush1.msra.mxu0 %v1137
          %1148 = vmatprep.subr.mxu0 0.0
          %1149 = vmatpush1.msra.mxu0 %v1138
          %1150 = vmatprep.subr.mxu0 0.0
          %1151 = vmatpush1.msra.mxu0 %v1139
          %1152 = vmatprep.subr.mxu0 0.0
          %1153 = vmatpush1.msra.mxu0 %v1140
          %1154 = vmatprep.subr.mxu0 0.0
          %1155 = vmatpush1.msra.mxu0 0.0
          %1156 = vmatprep.subr.mxu0 0.0
          %1157 = vmatpush1.msra.mxu0 0.0
          %1158 = vmatprep.subr.mxu0 0.0
          %1159 = vmatpush1.msra.mxu0 0.0
          %1160 = vmatprep.subr.mxu0 0.0
          %1161 = vmatpush1.msra.mxu0 0.0
          %1162 = vmatprep.subr.mxu0 0.0
          %1163 = vmatpush1.msra.mxu0 0.0
          %1164 = vmatprep.subr.mxu0 0.0
          %1165 = vmatpush1.msra.mxu0 0.0
          %1166 = vmatprep.subr.mxu0 0.0
          %1167 = vmatpush1.msra.mxu0 0.0
          %1168 = vmatprep.subr.mxu0 0.0
          %1169 = vmatpush1.msra.mxu0 0.0
          %1170 = vmatprep.subr.mxu0 0.0
          %1171 = vmatpush1.msra.mxu0 0.0
          %1172 = vmatprep.subr.mxu0 0.0
          %1173 = vmatpush1.msra.mxu0 0.0
          %1174 = vmatprep.subr.mxu0 0.0
          %1175 = vmatpush1.msra.mxu0 0.0
          %1176 = vmatprep.subr.mxu0 0.0
          %1177 = vmatpush1.msra.mxu0 0.0
          %1178 = vmatprep.subr.mxu0 0.0
          %1179 = vmatpush1.msra.mxu0 0.0
          %1180 = vmatprep.subr.mxu0 0.0
          %1181 = vmatpush1.msra.mxu0 0.0
          %1182 = vmatprep.subr.mxu0 0.0
          %1183 = vmatpush1.msra.mxu0 0.0
          %1184 = vmatprep.subr.mxu0 0.0
          %1185 = vmatpush1.msra.mxu0 0.0
          %1186 = vmatprep.subr.mxu0 0.0
          %1187 = vmatpush1.msra.mxu0 0.0
          %1188 = vmatprep.subr.mxu0 0.0
          %1189 = vmatpush1.msra.mxu0 0.0
          %1190 = vmatprep.subr.mxu0 0.0
          %1191 = vmatpush1.msra.mxu0 0.0
          %1192 = vmatprep.subr.mxu0 0.0
          %1193 = vmatpush1.msra.mxu0 0.0
          %1194 = vmatprep.subr.mxu0 0.0
          %1195 = vmatpush1.msra.mxu0 0.0
          %1196 = vmatprep.subr.mxu0 0.0
          %1197 = vmatpush1.msra.mxu0 0.0
          %1198 = vmatprep.subr.mxu0 0.0
          %1199 = vmatpush1.msra.mxu0 0.0
          %1200 = vmatprep.subr.mxu0 0.0
          %1201 = vmatpush1.msra.mxu0 0.0
          %1202 = vmatprep.subr.mxu0 0.0
          %1203 = vmatpush1.msra.mxu0 0.0
          %1204 = vmatprep.subr.mxu0 0.0
          %1205 = vmatpush1.msra.mxu0 0.0
          %1206 = vmatprep.subr.mxu0 0.0
          %1207 = vmatpush1.msra.mxu0 0.0
          %1208 = vmatprep.subr.mxu0 0.0
          %1209 = vmatpush1.msra.mxu0 0.0
          %1210 = vmatprep.mubr.f32.mxu0 0.0
          %1211 = vmatmul.mubr.f32.gmra.mrb[0].mxu0 %v1144
          %v1212 = vpop.f32.mrb[0].mxu0
          %v1213 = vadd.f32 0.0, %v1212
          %v1214 = vpop.f32.mrb[0].mxu0
          %1215 = vdwg.mxu0
          %vm1216 = vcmask 130048
          %v1218 = vsel %vm1216, %v787, 0
          %1220 = vmatprep.subr.mxu0 0.0
          %1221 = vmatpush1.msra.mxu0 %v1135
          %1222 = vmatprep.subr.mxu0 0.0
          %1223 = vmatpush1.msra.mxu0 %v1136
          %1224 = vmatprep.subr.mxu0 0.0
          %1225 = vmatpush1.msra.mxu0 0.0
          %1226 = vmatprep.subr.mxu0 0.0
          %1227 = vmatpush1.msra.mxu0 0.0
          %1228 = vmatprep.subr.mxu0 0.0
          %1229 = vmatpush1.msra.mxu0 0.0
          %1230 = vmatprep.subr.mxu0 0.0
          %1231 = vmatpush1.msra.mxu0 0.0
          %1232 = vmatprep.subr.mxu0 0.0
          %1233 = vmatpush1.msra.mxu0 0.0
          %1234 = vmatprep.subr.mxu0 0.0
          %1235 = vmatpush1.msra.mxu0 0.0
          %1236 = vmatprep.subr.mxu0 0.0
          %1237 = vmatpush1.msra.mxu0 0.0
          %1238 = vmatprep.subr.mxu0 0.0
          %1239 = vmatpush1.msra.mxu0 0.0
          %1240 = vmatprep.subr.mxu0 0.0
          %1241 = vmatpush1.msra.mxu0 0.0
          %1242 = vmatprep.subr.mxu0 0.0
          %1243 = vmatpush1.msra.mxu0 0.0
          %1244 = vmatprep.subr.mxu0 0.0
          %1245 = vmatpush1.msra.mxu0 0.0
          %1246 = vmatprep.subr.mxu0 0.0
          %1247 = vmatpush1.msra.mxu0 0.0
          %1248 = vmatprep.subr.mxu0 0.0
          %1249 = vmatpush1.msra.mxu0 0.0
          %1250 = vmatprep.subr.mxu0 0.0
          %1251 = vmatpush1.msra.mxu0 0.0
          %1252 = vmatprep.subr.mxu0 0.0
          %1253 = vmatpush1.msra.mxu0 0.0
          %1254 = vmatprep.subr.mxu0 0.0
          %1255 = vmatpush1.msra.mxu0 0.0
          %1256 = vmatprep.subr.mxu0 0.0
          %1257 = vmatpush1.msra.mxu0 0.0
          %1258 = vmatprep.subr.mxu0 0.0
          %1259 = vmatpush1.msra.mxu0 0.0
          %1260 = vmatprep.subr.mxu0 0.0
          %1261 = vmatpush1.msra.mxu0 0.0
          %1262 = vmatprep.subr.mxu0 0.0
          %1263 = vmatpush1.msra.mxu0 0.0
          %1264 = vmatprep.subr.mxu0 0.0
          %1265 = vmatpush1.msra.mxu0 0.0
          %1266 = vmatprep.subr.mxu0 0.0
          %1267 = vmatpush1.msra.mxu0 0.0
          %1268 = vmatprep.subr.mxu0 0.0
          %1269 = vmatpush1.msra.mxu0 0.0
          %1270 = vmatprep.subr.mxu0 0.0
          %1271 = vmatpush1.msra.mxu0 0.0
          %1272 = vmatprep.subr.mxu0 0.0
          %1273 = vmatpush1.msra.mxu0 0.0
          %1274 = vmatprep.subr.mxu0 0.0
          %1275 = vmatpush1.msra.mxu0 0.0
          %1276 = vmatprep.subr.mxu0 0.0
          %1277 = vmatpush1.msra.mxu0 0.0
          %1278 = vmatprep.subr.mxu0 0.0
          %1279 = vmatpush1.msra.mxu0 0.0
          %1280 = vmatprep.subr.mxu0 0.0
          %1281 = vmatpush1.msra.mxu0 0.0
          %1282 = vmatprep.subr.mxu0 0.0
          %1283 = vmatpush1.msra.mxu0 0.0
          %1284 = vmatprep.mubr.f32.mxu0 0.0
          %1285 = vmatmul.mubr.f32.gmra.mrb[0].mxu0 %v1218
          %v1286 = vpop.f32.mrb[0].mxu0
          %v1287 = vadd.f32 %v1213, %v1286
          %v1288 = vpop.f32.mrb[0].mxu0
          %1289 = vdwg.mxu0
          %v1290 = vld [vmem:[%s11] sm:$0xff]
          %v1291 = vld [vmem:[%s11 + $0x8] sm:$0xff]
          %v1292 = vld [vmem:[%s11 + $0x10] sm:$0xff]
          %v1293 = vld [vmem:[%s11 + $0x18] sm:$0xff]
          %1294 = vmatprep.subr.mxu0 0.0
          %1295 = vmatpush1.msra.mxu0 %v1290
          %1296 = vmatprep.subr.mxu0 0.0
          %1297 = vmatpush1.msra.mxu0 %v1291
          %1298 = vmatprep.subr.mxu0 0.0
          %1299 = vmatpush1.msra.mxu0 %v1292
          %1300 = vmatprep.subr.mxu0 0.0
          %1301 = vmatpush1.msra.mxu0 %v1293
          %1302 = vmatprep.subr.mxu0 0.0
          %1303 = vmatpush1.msra.mxu0 0.0
          %1304 = vmatprep.subr.mxu0 0.0
          %1305 = vmatpush1.msra.mxu0 0.0
          %1306 = vmatprep.subr.mxu0 0.0
          %1307 = vmatpush1.msra.mxu0 0.0
          %1308 = vmatprep.subr.mxu0 0.0
          %1309 = vmatpush1.msra.mxu0 0.0
          %1310 = vmatprep.subr.mxu0 0.0
          %1311 = vmatpush1.msra.mxu0 0.0
          %1312 = vmatprep.subr.mxu0 0.0
          %1313 = vmatpush1.msra.mxu0 0.0
          %1314 = vmatprep.subr.mxu0 0.0
          %1315 = vmatpush1.msra.mxu0 0.0
          %1316 = vmatprep.subr.mxu0 0.0
          %1317 = vmatpush1.msra.mxu0 0.0
          %1318 = vmatprep.subr.mxu0 0.0
          %1319 = vmatpush1.msra.mxu0 0.0
          %1320 = vmatprep.subr.mxu0 0.0
          %1321 = vmatpush1.msra.mxu0 0.0
          %1322 = vmatprep.subr.mxu0 0.0
          %1323 = vmatpush1.msra.mxu0 0.0
          %1324 = vmatprep.subr.mxu0 0.0
          %1325 = vmatpush1.msra.mxu0 0.0
          %1326 = vmatprep.subr.mxu0 0.0
          %1327 = vmatpush1.msra.mxu0 0.0
          %1328 = vmatprep.subr.mxu0 0.0
          %1329 = vmatpush1.msra.mxu0 0.0
          %1330 = vmatprep.subr.mxu0 0.0
          %1331 = vmatpush1.msra.mxu0 0.0
          %1332 = vmatprep.subr.mxu0 0.0
          %1333 = vmatpush1.msra.mxu0 0.0
          %1334 = vmatprep.subr.mxu0 0.0
          %1335 = vmatpush1.msra.mxu0 0.0
          %1336 = vmatprep.subr.mxu0 0.0
          %1337 = vmatpush1.msra.mxu0 0.0
          %1338 = vmatprep.subr.mxu0 0.0
          %1339 = vmatpush1.msra.mxu0 0.0
          %1340 = vmatprep.subr.mxu0 0.0
          %1341 = vmatpush1.msra.mxu0 0.0
          %1342 = vmatprep.subr.mxu0 0.0
          %1343 = vmatpush1.msra.mxu0 0.0
          %1344 = vmatprep.subr.mxu0 0.0
          %1345 = vmatpush1.msra.mxu0 0.0
          %1346 = vmatprep.subr.mxu0 0.0
          %1347 = vmatpush1.msra.mxu0 0.0
          %1348 = vmatprep.subr.mxu0 0.0
          %1349 = vmatpush1.msra.mxu0 0.0
          %1350 = vmatprep.subr.mxu0 0.0
          %1351 = vmatpush1.msra.mxu0 0.0
          %1352 = vmatprep.subr.mxu0 0.0
          %1353 = vmatpush1.msra.mxu0 0.0
          %1354 = vmatprep.subr.mxu0 0.0
          %1355 = vmatpush1.msra.mxu0 0.0
          %1356 = vmatprep.subr.mxu0 0.0
          %1357 = vmatpush1.msra.mxu0 0.0
          %1358 = vmatprep.mubr.f32.mxu0 0.0
          %1359 = vmatmul.mubr.f32.gmra.mrb[0].mxu0 %v800
          %v1360 = vpop.f32.mrb[0].mxu0
          %v1361 = vadd.f32 0.0, %v1360
          %v1362 = vpop.f32.mrb[0].mxu0
          %1363 = vdwg.mxu0
          %v1364 = vadd.f32 %v1287, %v1361
          %v1365 = vld [vmem:[#allocation16] sm:$0x1]
          %v1367 = vlaneseq
          %v1368 = vshrl.u32 %v1367, 7
          %v1369 = vsub.s32 0, %v1368
          %v1370 = vrot.slane %v1365, %v1369
          %v1372 = vadd.f32 %v1364, %v1370
          %v1373 = vxor.u32 %v1372, 2147483648
          %v1374 = vmul.f32 %v1373, 1.442695
          %v1375 = vpow.pop %v1374
          %v1376 = vadd.f32 %v1375, 1.0
          %v1377 = vrcp.pop %v1376
          %v1378 = vmul.f32 1.0, %v1377
          %v1379 = vtanh.pop %v1372
          %1381 = vrot.lane.b32.xlu0 %v789, 32
          %v1382 = vpop.permute.xlu0 %1381
          %v1384 = vmul.f32 %v1378, %v1382
          %1386 = vrot.lane.b32.xlu0 %v1379, 32
          %v1387 = vpop.permute.xlu0 %1386
          %v1389 = vmul.f32 %v1378, %v1387
          %1391 = vrot.lane.b32.xlu0 %v1389, 32
          %v1392 = vpop.permute.xlu0 %1391
          %v1394 = vadd.f32 %v1384, %v1392
          %v1395 = vtanh.pop %v1394
          %1397 = vrot.lane.b32.xlu0 %v1395, 32
          %v1398 = vpop.permute.xlu0 %1397
          %v1400 = vmul.f32 %v1378, %v1398
          %1402 = vrot.lane.b32.xlu0 %v1400, 64
          %v1403 = vpop.permute.xlu0 %1402
          %vm1405 = vcmask 254976
          %1406 = vst.msk [vmem:[#allocation20] sm:$0x3] %vm1405, %v1403
          %1408 = vrot.lane.b32.xlu0 %v1394, 96
          %v1409 = vpop.permute.xlu0 %1408
          %1411 = vst.msk [vmem:[#allocation22] sm:$0x3] %vm1405, %v1409
          %1412 = vst.msk [vmem:[#allocation23] sm:$0x3] %vm1079, %v1090
          %1413 = vst.msk [vmem:[#allocation3] sm:$0x3] %vm1405, %v1403
          %1414 = vrot.lane.b32.xlu0 %v1143, 32
          %v1415 = vpop.permute.xlu0 %1414
          %vm1417 = vcmask 517376
          %1418 = vst.msk [vmem:[#allocation3] sm:$0x3] %vm1417, %v1415
          %1419 = vrot.lane.b32.xlu0 %v787, 64
          %v1420 = vpop.permute.xlu0 %1419
          %vm1422 = vcmask 648704
          %1423 = vst.msk [vmem:[#allocation3] sm:$0x3] %vm1422, %v1420
        $region138: #{tpu_custom_call.1} parent=105 // pred_fallthru
          _
        %v1424 = vld [vmem:[#allocation3] sm:$0x3]
        %v1425 = vld [vmem:[%s631] sm:$0xff]
        %v1426 = vld [vmem:[%s631 + $0x8] sm:$0xff]
        %v1427 = vld [vmem:[%s631 + $0x10] sm:$0xff]
        %v1428 = vld [vmem:[%s631 + $0x18] sm:$0xff]
        %v1429 = vld [vmem:[%s631 + $0x20] sm:$0xff]
        %v1430 = vld [vmem:[%s631 + $0x28] sm:$0xff]
        %v1431 = vld [vmem:[%s631 + $0x30] sm:$0xff]
        %v1432 = vld [vmem:[%s631 + $0x38] sm:$0xff]
        %v1433 = vld [vmem:[%s631 + $0x40] sm:$0xff]
        %v1434 = vld [vmem:[%s631 + $0x48] sm:$0xff]
        %v1435 = vld [vmem:[%s683] sm:$0x1]
        %v1437 = vlaneseq
        %v1438 = vshrl.u32 %v1437, 7
        %v1439 = vsub.s32 0, %v1438
        %v1440 = vrot.slane %v1435, %v1439
        %vm1442 = vcmask 654336
        %v1444 = vsel %vm1442, %v1424, 0
        %1446 = vmatprep.subr.mxu0 0.0
        %1447 = vmatpush1.msra.mxu0 %v1425
        %1448 = vmatprep.subr.mxu0 0.0
        %1449 = vmatpush1.msra.mxu0 %v1426
        %1450 = vmatprep.subr.mxu0 0.0
        %1451 = vmatpush1.msra.mxu0 %v1427
        %1452 = vmatprep.subr.mxu0 0.0
        %1453 = vmatpush1.msra.mxu0 %v1428
        %1454 = vmatprep.subr.mxu0 0.0
        %1455 = vmatpush1.msra.mxu0 %v1429
        %1456 = vmatprep.subr.mxu0 0.0
        %1457 = vmatpush1.msra.mxu0 %v1430
        %1458 = vmatprep.subr.mxu0 0.0
        %1459 = vmatpush1.msra.mxu0 %v1431
        %1460 = vmatprep.subr.mxu0 0.0
        %1461 = vmatpush1.msra.mxu0 %v1432
        %1462 = vmatprep.subr.mxu0 0.0
        %1463 = vmatpush1.msra.mxu0 %v1433
        %1464 = vmatprep.subr.mxu0 0.0
        %1465 = vmatpush1.msra.mxu0 %v1434
        %1466 = vmatprep.subr.mxu0 0.0
        %1467 = vmatpush1.msra.mxu0 0.0
        %1468 = vmatprep.subr.mxu0 0.0
        %1469 = vmatpush1.msra.mxu0 0.0
        %1470 = vmatprep.subr.mxu0 0.0
        %1471 = vmatpush1.msra.mxu0 0.0
        %1472 = vmatprep.subr.mxu0 0.0
        %1473 = vmatpush1.msra.mxu0 0.0
        %1474 = vmatprep.subr.mxu0 0.0
        %1475 = vmatpush1.msra.mxu0 0.0
        %1476 = vmatprep.subr.mxu0 0.0
        %1477 = vmatpush1.msra.mxu0 0.0
        %1478 = vmatprep.subr.mxu0 0.0
        %1479 = vmatpush1.msra.mxu0 0.0
        %1480 = vmatprep.subr.mxu0 0.0
        %1481 = vmatpush1.msra.mxu0 0.0
        %1482 = vmatprep.subr.mxu0 0.0
        %1483 = vmatpush1.msra.mxu0 0.0
        %1484 = vmatprep.subr.mxu0 0.0
        %1485 = vmatpush1.msra.mxu0 0.0
        %1486 = vmatprep.subr.mxu0 0.0
        %1487 = vmatpush1.msra.mxu0 0.0
        %1488 = vmatprep.subr.mxu0 0.0
        %1489 = vmatpush1.msra.mxu0 0.0
        %1490 = vmatprep.subr.mxu0 0.0
        %1491 = vmatpush1.msra.mxu0 0.0
        %1492 = vmatprep.subr.mxu0 0.0
        %1493 = vmatpush1.msra.mxu0 0.0
        %1494 = vmatprep.subr.mxu0 0.0
        %1495 = vmatpush1.msra.mxu0 0.0
        %1496 = vmatprep.subr.mxu0 0.0
        %1497 = vmatpush1.msra.mxu0 0.0
        %1498 = vmatprep.subr.mxu0 0.0
        %1499 = vmatpush1.msra.mxu0 0.0
        %1500 = vmatprep.subr.mxu0 0.0
        %1501 = vmatpush1.msra.mxu0 0.0
        %1502 = vmatprep.subr.mxu0 0.0
        %1503 = vmatpush1.msra.mxu0 0.0
        %1504 = vmatprep.subr.mxu0 0.0
        %1505 = vmatpush1.msra.mxu0 0.0
        %1506 = vmatprep.subr.mxu0 0.0
        %1507 = vmatpush1.msra.mxu0 0.0
        %1508 = vmatprep.subr.mxu0 0.0
        %1509 = vmatpush1.msra.mxu0 0.0
        %1510 = vmatprep.mubr.f32.mxu0 0.0
        %1511 = vmatmul.mubr.f32.gmra.mrb[0].mxu0 %v1444
        %v1512 = vpop.f32.mrb[0].mxu0
        %v1513 = vadd.f32 %v1440, %v1512
        %v1514 = vpop.f32.mrb[0].mxu0
        %1515 = vdwg.mxu0
        %1516 = vst [vmem:[%s674] sm:$0x3] %v1513
        %s1517 = sand.u32 %s336, 1
        %s1518 = scalar_lea.sflag [#allocation9], %s1517
        %s1519 = sand.u32 %s336, 1
        %s1520 = smul.addr %s1519, 2
        %s1521 = scalar_lea.vmem [#allocation19], %s1520
        // Predicated region
        $region199: #{tpu_custom_call.1} parent=105 // pred_check
          %p1522 = pneg %p346
        $region200: #{tpu_custom_call.1} parent=105 // pred_check_branch
          %1524 = sbr.rel (%p1522) target = $region202
        $region201: #{tpu_custom_call.1} parent=105 // pred_region
          %s1526 = ssub.s32 32, 32
          %1527 = vsyncadd %s1518, %s1526
          %s1528 = smul.addr %s45, 32
          %s1529 = scalar_lea.hbm %s15, %s1528
          %s1531 = sshll.u32 %s1521, 4
          %s1532 = int_to_ptr.vmem [resolvable:$true] %s1531
          %1534 = dma.vmem_to_hbm [thread:$0]  %s1532, 32, %s1529, %s1518
        $region202: #{tpu_custom_call.1} parent=105 // pred_fallthru
          _
        // Predicated region
        $region203: #{tpu_custom_call.1} parent=105 // pred_check
          %p1535 = pneg %p367
        $region204: #{tpu_custom_call.1} parent=105 // pred_check_branch
          %1537 = sbr.rel (%p1535) target = $region206
        $region205: #{tpu_custom_call.1} parent=105 // pred_region
          %s1539 = ssub.s32 32, 32
          %1540 = vsyncadd [#allocation21], %s1539
          %s1542 = sshll.u32 [#allocation20], 4
          %s1543 = int_to_ptr.vmem [resolvable:$true] %s1542
          %1545 = dma.vmem_to_hbm [thread:$0]  %s1543, 32, %s16, [#allocation21]
        $region206: #{tpu_custom_call.1} parent=105 // pred_fallthru
          _
        // Predicated region
        $region207: #{tpu_custom_call.1} parent=105 // pred_check
          %p1546 = pneg %p388
        $region208: #{tpu_custom_call.1} parent=105 // pred_check_branch
          %1548 = sbr.rel (%p1546) target = $region210
        $region209: #{tpu_custom_call.1} parent=105 // pred_region
          %s1550 = ssub.s32 32, 32
          %1551 = vsyncadd [#allocation21], %s1550
          %s1553 = sshll.u32 [#allocation22], 4
          %s1554 = int_to_ptr.vmem [resolvable:$true] %s1553
          %1556 = dma.vmem_to_hbm [thread:$0]  %s1554, 32, %s17, [#allocation21]
        $region210: #{tpu_custom_call.1} parent=105 // pred_fallthru
          _
        // Predicated region
        $region211: #{tpu_custom_call.1} parent=105 // pred_check
          %p1557 = pneg %p409
        $region212: #{tpu_custom_call.1} parent=105 // pred_check_branch
          %1559 = sbr.rel (%p1557) target = $region214
        $region213: #{tpu_custom_call.1} parent=105 // pred_region
          %s1561 = ssub.s32 32, 32
          %1562 = vsyncadd [#allocation24], %s1561
          %s1564 = sshll.u32 [#allocation23], 4
          %s1565 = int_to_ptr.vmem [resolvable:$true] %s1564
          %1567 = dma.vmem_to_hbm [thread:$0]  %s1565, 32, %s18, [#allocation24]
        $region214: #{tpu_custom_call.1} parent=105 // pred_fallthru
          _
        // Predicated region
        $region215: #{tpu_custom_call.1} parent=105 // pred_check
          %p1568 = pneg %p367
        $region216: #{tpu_custom_call.1} parent=105 // pred_check_branch
          %1570 = sbr.rel (%p1568) target = $region218
        $region217: #{tpu_custom_call.1} parent=105 // pred_region
          %1571 = dma.done [#allocation21], 32
        $region218: #{tpu_custom_call.1} parent=105 // pred_fallthru
          _
        // Predicated region
        $region219: #{tpu_custom_call.1} parent=105 // pred_check
          %p1572 = pneg %p388
        $region220: #{tpu_custom_call.1} parent=105 // pred_check_branch
          %1574 = sbr.rel (%p1572) target = $region222
        $region221: #{tpu_custom_call.1} parent=105 // pred_region
          %1575 = dma.done [#allocation21], 32
        $region222: #{tpu_custom_call.1} parent=105 // pred_fallthru
          _
        // Predicated region
        $region223: #{tpu_custom_call.1} parent=105 // pred_check
          %p1576 = pneg %p409
        $region224: #{tpu_custom_call.1} parent=105 // pred_check_branch
          %1578 = sbr.rel (%p1576) target = $region226
        $region225: #{tpu_custom_call.1} parent=105 // pred_region
          %1579 = dma.done [#allocation24], 32
        $region226: #{tpu_custom_call.1} parent=105 // pred_fallthru
          _
      $region106: #{tpu_custom_call.1} parent=5 // pred_fallthru
        _
      %p1580 = scmp.le.s32.totalorder 2, %s40
      // Predicated region
      $region227: #{tpu_custom_call.1} parent=5 // pred_check
        %p1581 = pneg %p1580
      $region228: #{tpu_custom_call.1} parent=5 // pred_check_branch
        %1583 = sbr.rel (%p1581) target = $region230
      $region229: #{tpu_custom_call.1} parent=5 // pred_region
        %s1584 = ssub.s32 %s40, 2
        // Predicated region
        $region231: #{tpu_custom_call.1} parent=229 // pred_check
          %p1585 = pneg %p352
        $region232: #{tpu_custom_call.1} parent=229 // pred_check_branch
          %1587 = sbr.rel (%p1585) target = $region234
        $region233: #{tpu_custom_call.1} parent=229 // pred_region
          %s1588 = sand.u32 %s337, 1
          %s1589 = scalar_lea.sflag [#allocation9], %s1588
          %s1590 = sand.u32 %s337, 1
          %s1591 = smul.addr %s1590, 2
          %s1592 = scalar_lea.vmem [#allocation19], %s1591
          %1593 = dma.done %s1589, 32
        $region234: #{tpu_custom_call.1} parent=229 // pred_fallthru
          _
      $region230: #{tpu_custom_call.1} parent=5 // pred_fallthru
        _
    $region6: #{tpu_custom_call.1} parent=1 // loop_footer
      %s44 = sadd.s32 1, %s40
    $region7: #{tpu_custom_call.1} parent=1 // loop_footer_branch
      %39 = sbr.rel target = $region3
    $region8: #{tpu_custom_call.1} parent=1 // loop_exit
      _
    %1594 = vsyncpa [#allocation8], 1
    %s1595 = scalar_lea.sflag [#allocation8], 1
    %1596 = vsyncpa %s1595, 1
    %1597 = vsyncpa [#allocation11], 1
    %1598 = vsyncpa [#allocation14], 1
    %1599 = vsyncpa [#allocation17], 1
    %1600 = vsyncpa [#allocation9], 1
    %s1601 = scalar_lea.sflag [#allocation9], 1
    %1602 = vsyncpa %s1601, 1
    %1603 = vsyncpa [#allocation21], 1
    %1604 = vsyncpa [#allocation24], 1
  %1605 = vsyncmov [#allocation4]
  %s1606 = vpop.sfrf %1605
  %p1607 = scmp.eq.s32.totalorder %s1606, 0
  %p1608 = pneg %p1607
  %1610 = shalt.err (%p1608)
  %s1611 = scalar_lea.sflag [#allocation4], 1
  %1612 = vsyncmov %s1611
  %s1613 = vpop.sfrf %1612
  %p1614 = scmp.eq.s32.totalorder %s1613, 0
  %p1615 = pneg %p1614
  %1617 = shalt.err (%p1615)

</llo_original>
